<compile_context>
chip_gen: v5e
topology: v5e:2x2
jax: 0.10.0
libtpu: 0.0.40
codegen_flags: <defaults>
</compile_context>

<pallas_src>
import functools

import numpy as np
import jax
import jax.numpy as jnp
from jax.experimental import pallas as pl
from jax.experimental.pallas import tpu as pltpu


def _sinusoid_table(n_position, d_hid):
    """Matches PositionalEncoding._get_sinusoid_encoding_table."""
    pos = np.arange(n_position)[:, None].astype(np.float64)
    hid = np.arange(d_hid)[None, :]
    angle = pos / np.power(10000.0, 2.0 * (hid // 2) / d_hid)
    table = np.zeros((n_position, d_hid), dtype=np.float64)
    table[:, 0::2] = np.sin(angle[:, 0::2])
    table[:, 1::2] = np.cos(angle[:, 1::2])
    return jnp.asarray(table, dtype=jnp.float32)


def _textsubnet_kernel(x_ref, pos_ref, w_ref, aux_ref, o_ref, *, d_model):
    # x_ref:   [TB, S, D]   input embedding tile (native dtype, unpadded)
    # pos_ref: [S, D]       sinusoid positional table rows :S
    # w_ref:   [D, Cp]      folded classifier weight = (gamma[:,None] * W^T) / S (cols zero-padded)
    # aux_ref: [2, Cp]      row 0: folded bias = beta @ W^T + b ; row 1: colsum(W_fold)
    # o_ref:   [TB, Cp]     ReLU(logits); padded columns come out as zero.
    x = x_ref[...].astype(jnp.float32)
    pos = pos_ref[...].astype(jnp.float32)

    # enc = src_seq + (src_seq + pos_table)  == 2*x + pos  (module adds the input twice)
    h = 2.0 * x + pos[None, :, :]

    inv_d = 1.0 / float(d_model)
    mean = jnp.sum(h, axis=-1, keepdims=True) * inv_d                 # [TB,S,1]
    ex2 = jnp.sum(h * h, axis=-1, keepdims=True) * inv_d              # [TB,S,1]
    var = jnp.maximum(ex2 - mean * mean, 0.0)                         # guard f32 cancellation
    invstd = jax.lax.rsqrt(var + 1e-12)                               # [TB,S,1]

    # Rank-1 rewrite: sum_s (h - mean)*invstd == A - c, applied after the matmul.
    a = jnp.sum(h * invstd, axis=1)                                   # [TB, D]
    c = jnp.sum(mean * invstd, axis=1)                                # [TB, 1]

    aux = aux_ref[...]                                                # [2, Cp]
    bias = aux[0:1, :]                                                # folded bias
    wcol = aux[1:2, :]                                                # colsum of folded W

    logits = jnp.dot(a, w_ref[...], preferred_element_type=jnp.float32)
    logits = logits + bias - c * wcol
    o_ref[...] = jnp.maximum(logits, 0.0).astype(o_ref.dtype)


def _round_up(x, m):
    return ((x + m - 1) // m) * m


def _vmem_params():
    """(per-block f32 working-set budget, scoped vmem limit) adapted to the chip."""
    cap = None
    try:
        cap = int(pltpu.get_tpu_info().vmem_capacity_bytes)
    except Exception:
        cap = None
    if not cap or cap <= 0:
        cap = 64 * 1024 * 1024          # conservative: v7x per-TensorCore VMEM
    block_budget = max(2 * 1024 * 1024, min(16 * 1024 * 1024, cap // 8))
    vmem_limit = int(min(cap * 3 // 4, 96 * 1024 * 1024))
    return block_budget, vmem_limit


def _pick_batch_tile(B, S, D, budget_bytes):
    """Largest batch tile whose per-block f32 working set stays within budget, while
    guaranteeing multiple grid steps (v7x 2-TC sharding + pipeline overlap)."""
    per_row_f32 = S * D * 4
    tb = max(1, budget_bytes // per_row_f32)
    min_grid = max(2, min(8, B // 8))          # >=2 steps always; up to 8 for larger B
    tb = min(tb, B, max(1, pl.cdiv(B, min_grid)))
    if tb >= 8:
        tb = (tb // 8) * 8                     # sublane-align output store; round DOWN only
    return max(1, tb)


def textsubnet_attention_forward(src_seq, pos_table, ln_gamma, ln_beta,
                                 cls_w, cls_b, *, batch_tile=None):
    """src_seq: [B,S,D] float embeddings (any float dtype, streamed unpadded);
    cls_w: torch layout [num_class, D]; cls_b: [num_class]."""
    B, S, D = src_seq.shape
    C = cls_w.shape[0]
    c_pad = _round_up(C, 128)
    f32 = jnp.float32

    # Fold LayerNorm affine and the 1/S mean-pool factor into the classifier (host-side,
    # O(D*C) precompute instead of O(B*S*D) in-kernel elementwise work).
    w_fold = (ln_gamma.astype(f32)[:, None] * cls_w.astype(f32).T) / float(S)   # [D, C]
    b_fold = ln_beta.astype(f32) @ cls_w.astype(f32).T + cls_b.astype(f32)      # [C]
    w_colsum = jnp.sum(w_fold, axis=0)                                          # [C]

    # Pad only the SMALL operands to lane-dense shapes; padded cols are zero so padded
    # output lanes are exactly zero (lane-dense unmasked store, sliced off afterwards).
    w_p = jnp.pad(w_fold, ((0, 0), (0, c_pad - C)))
    aux_p = jnp.pad(jnp.stack([b_fold, w_colsum], axis=0), ((0, 0), (0, c_pad - C)))
    pos = pos_table[:S].astype(f32)

    block_budget, vmem_limit = _vmem_params()
    tb = batch_tile if batch_tile is not None else _pick_batch_tile(B, S, D, block_budget)
    tb = max(1, min(tb, B))
    grid = (pl.cdiv(B, tb),)

    x_bytes = B * S * D * src_seq.dtype.itemsize
    cost = pl.CostEstimate(
        flops=6 * B * S * D + 2 * B * D * c_pad,
        transcendentals=B * S,
        bytes_accessed=x_bytes + 4 * (S * D + D * c_pad + 2 * c_pad + B * c_pad),
    )

    kernel = functools.partial(_textsubnet_kernel, d_model=D)

    def build_and_run(single_buffer_consts):
        const_kw = {}
        if single_buffer_consts:
            const_kw = dict(pipeline_mode=pl.Buffered(1))   # grid-invariant: no double buffer
        in_specs = [
            pl.BlockSpec((tb, S, D), lambda i: (i, 0, 0)),               # batch-tiled input
            pl.BlockSpec((S, D), lambda i: (0, 0), **const_kw),          # pos table (resident)
            pl.BlockSpec((D, c_pad), lambda i: (0, 0), **const_kw),      # folded classifier W
            pl.BlockSpec((2, c_pad), lambda i: (0, 0), **const_kw),      # folded bias + colsum
        ]
        out = pl.pallas_call(
            kernel,
            out_shape=jax.ShapeDtypeStruct((B, c_pad), f32),
            grid=grid,
            in_specs=in_specs,
            out_specs=pl.BlockSpec((tb, c_pad), lambda i: (i, 0)),
            compiler_params=pltpu.CompilerParams(
                dimension_semantics=("parallel",),            # 2-TC sharding on v7x
                vmem_limit_bytes=vmem_limit),
            cost_estimate=cost,
        )(src_seq, pos, w_p, aux_p)
        return jax.block_until_ready(out)

    if hasattr(pl, "Buffered"):
        try:
            out = build_and_run(True)
        except Exception:
            out = build_and_run(False)      # fallback if Buffered(1) unsupported
    else:
        out = build_and_run(False)
    return out[:, :C]


if __name__ == "__main__":
    # Small but lane-dense shapes (production: d_model = d_classifier = 512, num_class = 2).
    B, S, D, C = 16, 16, 128, 2
    n_position = 200

    key = jax.random.PRNGKey(0)
    k_x, k_w, k_b, k_g, k_be = jax.random.split(key, 5)

    src_seq = jax.random.normal(k_x, (B, S, D), dtype=jnp.float32)

    # Deterministic synthetic parameters (non-trivial gamma/beta to exercise the folding).
    pos_table = _sinusoid_table(n_position, D)                       # [n_position, D]
    ln_gamma = 1.0 + 0.1 * jax.random.normal(k_g, (D,), dtype=jnp.float32)
    ln_beta = 0.1 * jax.random.normal(k_be, (D,), dtype=jnp.float32)
    cls_w = jax.random.normal(k_w, (C, D), dtype=jnp.float32) * 0.1  # torch layout [out, in]
    cls_b = jax.random.normal(k_b, (C,), dtype=jnp.float32) * 0.1

    out = textsubnet_attention_forward(src_seq, pos_table, ln_gamma, ln_beta,
                                       cls_w, cls_b)                 # default picker: tb=8, grid=(2,)
    out = jax.block_until_ready(out)

    # Float64 numpy reference following the torch module exactly.
    x64 = np.asarray(src_seq, dtype=np.float64)
    pos64 = np.asarray(pos_table[:S], dtype=np.float64)
    g64 = np.asarray(ln_gamma, dtype=np.float64)
    be64 = np.asarray(ln_beta, dtype=np.float64)
    w64 = np.asarray(cls_w, dtype=np.float64)
    b64 = np.asarray(cls_b, dtype=np.float64)

    h = 2.0 * x64 + pos64[None, :, :]
    mean = h.mean(axis=-1, keepdims=True)
    var = ((h - mean) ** 2).mean(axis=-1, keepdims=True)
    hn = (h - mean) / np.sqrt(var + 1e-12) * g64 + be64
    pooled = hn.mean(axis=1)
    ref = np.maximum(pooled @ w64.T + b64, 0.0)

    np.testing.assert_allclose(np.asarray(out), ref, rtol=1e-4, atol=1e-4)

    print("KERNEL_OK")
</pallas_src>

<mosaic_0001>
module attributes {stable_mosaic.version = 11 : i64} {
  func.func @_textsubnet_kernel(%arg0: i32, %arg1: memref<8x16x128xf32, #tpu.memory_space<vmem>>, %arg2: memref<16x128xf32, #tpu.memory_space<vmem>>, %arg3: memref<128x128xf32, #tpu.memory_space<vmem>>, %arg4: memref<2x128xf32, #tpu.memory_space<vmem>>, %arg5: memref<8x128xf32, #tpu.memory_space<vmem>>) attributes {dimension_semantics = [#tpu.dimension_semantics<parallel>], iteration_bounds = array<i64: 2>, scalar_prefetch = 0 : i64, scratch_operands = 0 : i64, tpu.core_type = #tpu.core_type<tc>, window_params = [{transform_indices = @transform_0, window_bounds = array<i64: 8, 16, 128>}, {pipeline_mode = #tpu.pipeline_mode<synchronous>, transform_indices = @transform_1, window_bounds = array<i64: 16, 128>}, {pipeline_mode = #tpu.pipeline_mode<synchronous>, transform_indices = @transform_2, window_bounds = array<i64: 128, 128>}, {pipeline_mode = #tpu.pipeline_mode<synchronous>, transform_indices = @transform_3, window_bounds = array<i64: 2, 128>}, {transform_indices = @transform_4, window_bounds = array<i64: 8, 128>}]} {
    %c0 = arith.constant 0 : index
    %c0_0 = arith.constant 0 : index
    %c0_1 = arith.constant 0 : index
    %0 = vector.load %arg1[%c0, %c0_0, %c0_1] : memref<8x16x128xf32, #tpu.memory_space<vmem>>, vector<8x16x128xf32>
    %c0_2 = arith.constant 0 : index
    %c0_3 = arith.constant 0 : index
    %1 = vector.load %arg2[%c0_2, %c0_3] : memref<16x128xf32, #tpu.memory_space<vmem>>, vector<16x128xf32>
    %cst = arith.constant 2.000000e+00 : f32
    %2 = vector.broadcast %cst : f32 to vector<8x16x128xf32>
    %3 = arith.mulf %2, %0 : vector<8x16x128xf32>
    %4 = vector.shape_cast %1 : vector<16x128xf32> to vector<1x16x128xf32>
    %5 = vector.broadcast %4 : vector<1x16x128xf32> to vector<8x16x128xf32>
    %6 = arith.addf %3, %5 : vector<8x16x128xf32>
    %cst_4 = arith.constant dense<0.000000e+00> : vector<8x16xf32>
    %7 = vector.multi_reduction <add>, %6, %cst_4 [2] : vector<8x16x128xf32> to vector<8x16xf32>
    %8 = vector.shape_cast %7 : vector<8x16xf32> to vector<8x16x1xf32>
    %cst_5 = arith.constant 7.812500e-03 : f32
    %9 = vector.broadcast %cst_5 : f32 to vector<8x16x1xf32>
    %10 = arith.mulf %8, %9 : vector<8x16x1xf32>
    %11 = arith.mulf %6, %6 : vector<8x16x128xf32>
    %cst_6 = arith.constant dense<0.000000e+00> : vector<8x16xf32>
    %12 = vector.multi_reduction <add>, %11, %cst_6 [2] : vector<8x16x128xf32> to vector<8x16xf32>
    %13 = vector.shape_cast %12 : vector<8x16xf32> to vector<8x16x1xf32>
    %cst_7 = arith.constant 7.812500e-03 : f32
    %14 = vector.broadcast %cst_7 : f32 to vector<8x16x1xf32>
    %15 = arith.mulf %13, %14 : vector<8x16x1xf32>
    %16 = arith.mulf %10, %10 : vector<8x16x1xf32>
    %17 = arith.subf %15, %16 : vector<8x16x1xf32>
    %cst_8 = arith.constant 0.000000e+00 : f32
    %18 = vector.broadcast %cst_8 : f32 to vector<8x16x1xf32>
    %19 = arith.maximumf %17, %18 : vector<8x16x1xf32>
    %cst_9 = arith.constant 9.99999996E-13 : f32
    %20 = vector.broadcast %cst_9 : f32 to vector<8x16x1xf32>
    %21 = arith.addf %19, %20 : vector<8x16x1xf32>
    %22 = math.rsqrt %21 : vector<8x16x1xf32>
    %23 = vector.broadcast %22 : vector<8x16x1xf32> to vector<8x16x128xf32>
    %24 = arith.mulf %6, %23 : vector<8x16x128xf32>
    %cst_10 = arith.constant dense<0.000000e+00> : vector<8x128xf32>
    %25 = vector.multi_reduction <add>, %24, %cst_10 [1] : vector<8x16x128xf32> to vector<8x128xf32>
    %26 = arith.mulf %10, %22 : vector<8x16x1xf32>
    %cst_11 = arith.constant dense<0.000000e+00> : vector<8x1xf32>
    %27 = vector.multi_reduction <add>, %26, %cst_11 [1] : vector<8x16x1xf32> to vector<8x1xf32>
    %c0_12 = arith.constant 0 : index
    %c0_13 = arith.constant 0 : index
    %28 = vector.load %arg4[%c0_12, %c0_13] : memref<2x128xf32, #tpu.memory_space<vmem>>, vector<2x128xf32>
    %29 = vector.extract_strided_slice %28 {offsets = [0, 0], sizes = [1, 128], strides = [1, 1]} : vector<2x128xf32> to vector<1x128xf32>
    %30 = vector.extract_strided_slice %28 {offsets = [1, 0], sizes = [1, 128], strides = [1, 1]} : vector<2x128xf32> to vector<1x128xf32>
    %c0_14 = arith.constant 0 : index
    %c0_15 = arith.constant 0 : index
    %31 = vector.load %arg3[%c0_14, %c0_15] : memref<128x128xf32, #tpu.memory_space<vmem>>, vector<128x128xf32>
    %cst_16 = arith.constant dense<0.000000e+00> : vector<8x128xf32>
    %32 = tpu.matmul %25, %31, %cst_16 {dimension_numbers = #tpu.dot_dimension_numbers<[1], [0], [0], [1], [0, 0, 1, 1], [], []>} : vector<8x128xf32>, vector<128x128xf32>, vector<8x128xf32> -> vector<8x128xf32>
    %33 = vector.broadcast %29 : vector<1x128xf32> to vector<8x128xf32>
    %34 = arith.addf %32, %33 : vector<8x128xf32>
    %35 = vector.broadcast %27 : vector<8x1xf32> to vector<8x128xf32>
    %36 = vector.broadcast %30 : vector<1x128xf32> to vector<8x128xf32>
    %37 = arith.mulf %35, %36 : vector<8x128xf32>
    %38 = arith.subf %34, %37 : vector<8x128xf32>
    %cst_17 = arith.constant 0.000000e+00 : f32
    %39 = vector.broadcast %cst_17 : f32 to vector<8x128xf32>
    %40 = arith.maximumf %38, %39 : vector<8x128xf32>
    %c0_18 = arith.constant 0 : index
    %c0_19 = arith.constant 0 : index
    %41 = vector.load %arg5[%c0_18, %c0_19] : memref<8x128xf32, #tpu.memory_space<vmem>>, vector<8x128xf32>
    tpu.vector_store %arg5[%c0_18, %c0_19], %40 {strides = array<i32>} : memref<8x128xf32, #tpu.memory_space<vmem>>, vector<8x128xf32>,
    return
  }
  func.func @transform_0(%arg0: i32) -> (i32, i32, i32) {
    %c0_i32 = arith.constant 0 : i32
    %c0_i32_0 = arith.constant 0 : i32
    %c0_i32_1 = arith.constant 0 : i32
    return %arg0, %c0_i32, %c0_i32_0 : i32, i32, i32
  }
  func.func @transform_1(%arg0: i32) -> (i32, i32) {
    %c0_i32 = arith.constant 0 : i32
    %c0_i32_0 = arith.constant 0 : i32
    %c0_i32_1 = arith.constant 0 : i32
    return %c0_i32, %c0_i32_0 : i32, i32
  }
  func.func @transform_2(%arg0: i32) -> (i32, i32) {
    %c0_i32 = arith.constant 0 : i32
    %c0_i32_0 = arith.constant 0 : i32
    %c0_i32_1 = arith.constant 0 : i32
    return %c0_i32, %c0_i32_0 : i32, i32
  }
  func.func @transform_3(%arg0: i32) -> (i32, i32) {
    %c0_i32 = arith.constant 0 : i32
    %c0_i32_0 = arith.constant 0 : i32
    %c0_i32_1 = arith.constant 0 : i32
    return %c0_i32, %c0_i32_0 : i32, i32
  }
  func.func @transform_4(%arg0: i32) -> (i32, i32) {
    %c0_i32 = arith.constant 0 : i32
    %c0_i32_0 = arith.constant 0 : i32
    return %arg0, %c0_i32 : i32, i32
  }
}

module attributes {stable_mosaic.version = 11 : i64} {
  func.func @_textsubnet_kernel(%arg0: i32, %arg1: memref<8x16x128xf32, #tpu.memory_space<vmem>>, %arg2: memref<16x128xf32, #tpu.memory_space<vmem>>, %arg3: memref<128x128xf32, #tpu.memory_space<vmem>>, %arg4: memref<2x128xf32, #tpu.memory_space<vmem>>, %arg5: memref<8x128xf32, #tpu.memory_space<vmem>>) attributes {dimension_semantics = [#tpu.dimension_semantics<parallel>], iteration_bounds = array<i64: 2>, scalar_prefetch = 0 : i64, scratch_operands = 0 : i64, tpu.core_type = #tpu.core_type<tc>, window_params = [{transform_indices = @transform_0, window_bounds = array<i64: 8, 16, 128>}, {pipeline_mode = #tpu.pipeline_mode<synchronous>, transform_indices = @transform_1, window_bounds = array<i64: 16, 128>}, {pipeline_mode = #tpu.pipeline_mode<synchronous>, transform_indices = @transform_2, window_bounds = array<i64: 128, 128>}, {pipeline_mode = #tpu.pipeline_mode<synchronous>, transform_indices = @transform_3, window_bounds = array<i64: 2, 128>}, {transform_indices = @transform_4, window_bounds = array<i64: 8, 128>}]} {
    %c0 = arith.constant 0 : index
    %c0_0 = arith.constant 0 : index
    %c0_1 = arith.constant 0 : index
    %0 = vector.load %arg1[%c0, %c0_0, %c0_1] : memref<8x16x128xf32, #tpu.memory_space<vmem>>, vector<8x16x128xf32>
    %c0_2 = arith.constant 0 : index
    %c0_3 = arith.constant 0 : index
    %1 = vector.load %arg2[%c0_2, %c0_3] : memref<16x128xf32, #tpu.memory_space<vmem>>, vector<16x128xf32>
    %cst = arith.constant 2.000000e+00 : f32
    %2 = vector.broadcast %cst : f32 to vector<8x16x128xf32>
    %3 = arith.mulf %2, %0 : vector<8x16x128xf32>
    %4 = vector.shape_cast %1 : vector<16x128xf32> to vector<1x16x128xf32>
    %5 = vector.broadcast %4 : vector<1x16x128xf32> to vector<8x16x128xf32>
    %6 = arith.addf %3, %5 : vector<8x16x128xf32>
    %cst_4 = arith.constant dense<0.000000e+00> : vector<8x16xf32>
    %7 = vector.multi_reduction <add>, %6, %cst_4 [2] : vector<8x16x128xf32> to vector<8x16xf32>
    %8 = vector.shape_cast %7 : vector<8x16xf32> to vector<8x16x1xf32>
    %cst_5 = arith.constant 7.812500e-03 : f32
    %9 = vector.broadcast %cst_5 : f32 to vector<8x16x1xf32>
    %10 = arith.mulf %8, %9 : vector<8x16x1xf32>
    %11 = arith.mulf %6, %6 : vector<8x16x128xf32>
    %cst_6 = arith.constant dense<0.000000e+00> : vector<8x16xf32>
    %12 = vector.multi_reduction <add>, %11, %cst_6 [2] : vector<8x16x128xf32> to vector<8x16xf32>
    %13 = vector.shape_cast %12 : vector<8x16xf32> to vector<8x16x1xf32>
    %cst_7 = arith.constant 7.812500e-03 : f32
    %14 = vector.broadcast %cst_7 : f32 to vector<8x16x1xf32>
    %15 = arith.mulf %13, %14 : vector<8x16x1xf32>
    %16 = arith.mulf %10, %10 : vector<8x16x1xf32>
    %17 = arith.subf %15, %16 : vector<8x16x1xf32>
    %cst_8 = arith.constant 0.000000e+00 : f32
    %18 = vector.broadcast %cst_8 : f32 to vector<8x16x1xf32>
    %19 = arith.maximumf %17, %18 : vector<8x16x1xf32>
    %cst_9 = arith.constant 9.99999996E-13 : f32
    %20 = vector.broadcast %cst_9 : f32 to vector<8x16x1xf32>
    %21 = arith.addf %19, %20 : vector<8x16x1xf32>
    %22 = math.rsqrt %21 : vector<8x16x1xf32>
    %23 = vector.broadcast %22 : vector<8x16x1xf32> to vector<8x16x128xf32>
    %24 = arith.mulf %6, %23 : vector<8x16x128xf32>
    %cst_10 = arith.constant dense<0.000000e+00> : vector<8x128xf32>
    %25 = vector.multi_reduction <add>, %24, %cst_10 [1] : vector<8x16x128xf32> to vector<8x128xf32>
    %26 = arith.mulf %10, %22 : vector<8x16x1xf32>
    %cst_11 = arith.constant dense<0.000000e+00> : vector<8x1xf32>
    %27 = vector.multi_reduction <add>, %26, %cst_11 [1] : vector<8x16x1xf32> to vector<8x1xf32>
    %c0_12 = arith.constant 0 : index
    %c0_13 = arith.constant 0 : index
    %28 = vector.load %arg4[%c0_12, %c0_13] : memref<2x128xf32, #tpu.memory_space<vmem>>, vector<2x128xf32>
    %29 = vector.extract_strided_slice %28 {offsets = [0, 0], sizes = [1, 128], strides = [1, 1]} : vector<2x128xf32> to vector<1x128xf32>
    %30 = vector.extract_strided_slice %28 {offsets = [1, 0], sizes = [1, 128], strides = [1, 1]} : vector<2x128xf32> to vector<1x128xf32>
    %c0_14 = arith.constant 0 : index
    %c0_15 = arith.constant 0 : index
    %31 = vector.load %arg3[%c0_14, %c0_15] : memref<128x128xf32, #tpu.memory_space<vmem>>, vector<128x128xf32>
    %cst_16 = arith.constant dense<0.000000e+00> : vector<8x128xf32>
    %32 = tpu.matmul %25, %31, %cst_16 {dimension_numbers = #tpu.dot_dimension_numbers<[1], [0], [0], [1], [0, 0, 1, 1], [], []>} : vector<8x128xf32>, vector<128x128xf32>, vector<8x128xf32> -> vector<8x128xf32>
    %33 = vector.broadcast %29 : vector<1x128xf32> to vector<8x128xf32>
    %34 = arith.addf %32, %33 : vector<8x128xf32>
    %35 = vector.broadcast %27 : vector<8x1xf32> to vector<8x128xf32>
    %36 = vector.broadcast %30 : vector<1x128xf32> to vector<8x128xf32>
    %37 = arith.mulf %35, %36 : vector<8x128xf32>
    %38 = arith.subf %34, %37 : vector<8x128xf32>
    %cst_17 = arith.constant 0.000000e+00 : f32
    %39 = vector.broadcast %cst_17 : f32 to vector<8x128xf32>
    %40 = arith.maximumf %38, %39 : vector<8x128xf32>
    %c0_18 = arith.constant 0 : index
    %c0_19 = arith.constant 0 : index
    %41 = vector.load %arg5[%c0_18, %c0_19] : memref<8x128xf32, #tpu.memory_space<vmem>>, vector<8x128xf32>
    tpu.vector_store %arg5[%c0_18, %c0_19], %40 {strides = array<i32>} : memref<8x128xf32, #tpu.memory_space<vmem>>, vector<8x128xf32>,
    return
  }
  func.func @transform_0(%arg0: i32) -> (i32, i32, i32) {
    %c0_i32 = arith.constant 0 : i32
    %c0_i32_0 = arith.constant 0 : i32
    %c0_i32_1 = arith.constant 0 : i32
    return %arg0, %c0_i32, %c0_i32_0 : i32, i32, i32
  }
  func.func @transform_1(%arg0: i32) -> (i32, i32) {
    %c0_i32 = arith.constant 0 : i32
    %c0_i32_0 = arith.constant 0 : i32
    %c0_i32_1 = arith.constant 0 : i32
    return %c0_i32, %c0_i32_0 : i32, i32
  }
  func.func @transform_2(%arg0: i32) -> (i32, i32) {
    %c0_i32 = arith.constant 0 : i32
    %c0_i32_0 = arith.constant 0 : i32
    %c0_i32_1 = arith.constant 0 : i32
    return %c0_i32, %c0_i32_0 : i32, i32
  }
  func.func @transform_3(%arg0: i32) -> (i32, i32) {
    %c0_i32 = arith.constant 0 : i32
    %c0_i32_0 = arith.constant 0 : i32
    %c0_i32_1 = arith.constant 0 : i32
    return %c0_i32, %c0_i32_0 : i32, i32
  }
  func.func @transform_4(%arg0: i32) -> (i32, i32) {
    %c0_i32 = arith.constant 0 : i32
    %c0_i32_0 = arith.constant 0 : i32
    return %arg0, %c0_i32 : i32, i32
  }
}

</mosaic_0001>

<llo_original>
// kernel: tpu_custom_call.1
$region0: #{tpu_custom_call.1}
  #allocation0 [shape = 'u32[]', space=smem, size = 0x4, offset = 0x4, fixed_abs, tag = 'smem constant byte address 0x4 - core index']
  #allocation1 [shape = 'u32[72,128]{1,0:T(1,128)}', space=vmem, size = 0x9000, scoped, tag = 'internal scratch']
  %s0 = inlined_call_operand.hbm [shape: f32[16,16,128], index: 0, kind: input, shape index: {}]
  %s1 = inlined_call_operand.hbm [shape: f32[16,128], index: 1, kind: input, shape index: {}]
  %s2 = inlined_call_operand.hbm [shape: f32[128,128], index: 2, kind: input, shape index: {}]
  %s3 = inlined_call_operand.vmem [shape: f32[2,128], index: 3, kind: input, shape index: {}]
  %s4 = inlined_call_operand.hbm [shape: f32[16,128], index: 4, kind: output, shape index: {}]
  %s5 = sld [smem:[#allocation0]]
  $region61: #{tpu_custom_call.1} parent=0
    _
  %s7 = ssub.s32 1, %s5
  %s8 = scalar_select 0, %s7, %s5
  $region1: #{tpu_custom_call.1} parent=0
    #allocation2 [shape = 'u8[131072]{0}', space=vmem, size = 0x20000, scoped, tag = 'input window, operand 0']
    #allocation3 [shape = 's32[2]{0}', space=sflag, size = 0x8, scoped, tag = 'scoped memory for tpu_custom_call.1']
    #allocation4 [shape = 's32[2]{0}', space=sflag, size = 0x8, scoped, tag = 'scoped memory for tpu_custom_call.1']
    #allocation5 [shape = 'u8[8192]{0}', space=vmem, size = 0x2000, scoped, tag = 'input window, operand 1, single buffered']
    #allocation6 [shape = 's32[1]{0}', space=sflag, size = 0x4, scoped, tag = 'scoped memory for tpu_custom_call.1']
    #allocation7 [shape = 'u8[65536]{0}', space=vmem, size = 0x10000, scoped, tag = 'input window, operand 2, single buffered']
    #allocation8 [shape = 'u8[8192]{0}', space=vmem, size = 0x2000, scoped, tag = 'output window, operand 0']
    %9 = vsyncpa [#allocation3], 0
    %s10 = scalar_lea.sflag [#allocation3], 1
    %11 = vsyncpa %s10, 0
    %12 = vsyncpa [#allocation6], 0
    %13 = vsyncpa [#allocation4], 0
    %s14 = scalar_lea.sflag [#allocation4], 1
    %15 = vsyncpa %s14, 0
    loop: start=0, step=1, limit=4
    $region2: #{tpu_custom_call.1} parent=1 // loop_pre_header
      _
    $region3: #{tpu_custom_call.1} parent=1 // loop_header
      %s17 = sphi 0, %s21
      %p18 = scmp.ge.s32.totalorder %s17, 4
      %s27 = sphi 0, %s29
      %s30 = sphi 0, %s27
      %s31 = sphi 0, %s30
      %s47 = sphi 0, %s31
      %s51 = sphi 0, %s51
      %s53 = sphi 0, %s51
      %s54 = sphi 0, %s53
      %s68 = sphi 0, %s54
      %s72 = sphi 0, %s72
      %s74 = sphi 0, %s72
      %s75 = sphi 0, %s74
      %s89 = sphi 0, %s75
      %s93 = sphi 0, %s93
      %s95 = sphi 0, %s93
      %s96 = sphi 0, %s95
      %s110 = sphi 0, %s96
      %s116 = sphi 0, %s118
      %s119 = sphi 0, %s116
      %s120 = sphi 0, %s119
      %s136 = sphi 0, %s120
    $region4: #{tpu_custom_call.1} parent=1 // loop_header_branch
      %20 = sbr.rel (%p18) target = $region8
    $region5: #{tpu_custom_call.1} parent=1 // loop_body
      %s22 = ssub.s32 %s17, 1
      %s23 = ssub.s32 %s17, 2
      %s24 = sadd.s32 %s17, 1
      %s25 = ssub.s32 %s17, %s24
      %p26 = scmp.eq.s32.totalorder %s25, 0
      %s28 = sadd.s32 %s27, 1
      %s29 = scalar_select %p26, %s27, %s28
      %p32 = pneg %p26
      %p33 = scmp.eq.s32.totalorder %s17, 1
      %p34 = por %p32, %p33
      %p35 = scmp.ne.s32.totalorder %s27, %s30
      %p36 = scmp.eq.s32.totalorder %s17, 0
      %p37 = por %p35, %p36
      %p38 = scmp.ne.s32.totalorder %s27, %s30
      %p39 = scmp.eq.s32.totalorder %s22, 1
      %p40 = por %p38, %p39
      %p41 = scmp.ne.s32.totalorder %s30, %s31
      %p42 = scmp.eq.s32.totalorder %s22, 0
      %p43 = por %p41, %p42
      %p44 = scmp.ne.s32.totalorder %s30, %s31
      %p45 = scmp.eq.s32.totalorder %s23, 1
      %p46 = por %p44, %p45
      %p48 = scmp.ne.s32.totalorder %s31, %s47
      %p49 = scmp.eq.s32.totalorder %s23, 0
      %p50 = por %p48, %p49
      %s52 = sadd.s32 %s51, 1
      %p55 = scmp.eq.s32.totalorder %s17, 1
      %p56 = scmp.ne.s32.totalorder %s51, %s53
      %p57 = scmp.eq.s32.totalorder %s17, 0
      %p58 = por %p56, %p57
      %p59 = scmp.ne.s32.totalorder %s51, %s53
      %p60 = scmp.eq.s32.totalorder %s22, 1
      %p61 = por %p59, %p60
      %p62 = scmp.ne.s32.totalorder %s53, %s54
      %p63 = scmp.eq.s32.totalorder %s22, 0
      %p64 = por %p62, %p63
      %p65 = scmp.ne.s32.totalorder %s53, %s54
      %p66 = scmp.eq.s32.totalorder %s23, 1
      %p67 = por %p65, %p66
      %p69 = scmp.ne.s32.totalorder %s54, %s68
      %p70 = scmp.eq.s32.totalorder %s23, 0
      %p71 = por %p69, %p70
      %s73 = sadd.s32 %s72, 1
      %p76 = scmp.eq.s32.totalorder %s17, 1
      %p77 = scmp.ne.s32.totalorder %s72, %s74
      %p78 = scmp.eq.s32.totalorder %s17, 0
      %p79 = por %p77, %p78
      %p80 = scmp.ne.s32.totalorder %s72, %s74
      %p81 = scmp.eq.s32.totalorder %s22, 1
      %p82 = por %p80, %p81
      %p83 = scmp.ne.s32.totalorder %s74, %s75
      %p84 = scmp.eq.s32.totalorder %s22, 0
      %p85 = por %p83, %p84
      %p86 = scmp.ne.s32.totalorder %s74, %s75
      %p87 = scmp.eq.s32.totalorder %s23, 1
      %p88 = por %p86, %p87
      %p90 = scmp.ne.s32.totalorder %s75, %s89
      %p91 = scmp.eq.s32.totalorder %s23, 0
      %p92 = por %p90, %p91
      %s94 = sadd.s32 %s93, 1
      %p97 = scmp.eq.s32.totalorder %s17, 1
      %p98 = scmp.ne.s32.totalorder %s93, %s95
      %p99 = scmp.eq.s32.totalorder %s17, 0
      %p100 = por %p98, %p99
      %p101 = scmp.ne.s32.totalorder %s93, %s95
      %p102 = scmp.eq.s32.totalorder %s22, 1
      %p103 = por %p101, %p102
      %p104 = scmp.ne.s32.totalorder %s95, %s96
      %p105 = scmp.eq.s32.totalorder %s22, 0
      %p106 = por %p104, %p105
      %p107 = scmp.ne.s32.totalorder %s95, %s96
      %p108 = scmp.eq.s32.totalorder %s23, 1
      %p109 = por %p107, %p108
      %p111 = scmp.ne.s32.totalorder %s96, %s110
      %p112 = scmp.eq.s32.totalorder %s23, 0
      %p113 = por %p111, %p112
      %s114 = ssub.s32 %s17, %s24
      %p115 = scmp.eq.s32.totalorder %s114, 0
      %s117 = sadd.s32 %s116, 1
      %s118 = scalar_select %p115, %s116, %s117
      %p121 = pneg %p115
      %p122 = scmp.eq.s32.totalorder %s17, 1
      %p123 = por %p121, %p122
      %p124 = scmp.ne.s32.totalorder %s116, %s119
      %p125 = scmp.eq.s32.totalorder %s17, 0
      %p126 = por %p124, %p125
      %p127 = scmp.ne.s32.totalorder %s116, %s119
      %p128 = scmp.eq.s32.totalorder %s22, 1
      %p129 = por %p127, %p128
      %p130 = scmp.ne.s32.totalorder %s119, %s120
      %p131 = scmp.eq.s32.totalorder %s22, 0
      %p132 = por %p130, %p131
      %p133 = scmp.ne.s32.totalorder %s119, %s120
      %p134 = scmp.eq.s32.totalorder %s23, 1
      %p135 = por %p133, %p134
      %p137 = scmp.ne.s32.totalorder %s120, %s136
      %p138 = scmp.eq.s32.totalorder %s23, 0
      %p139 = por %p137, %p138
      %p140 = scmp.le.s32.totalorder 1, %s17
      %p141 = scmp.lt.s32.totalorder %s17, 3
      %p142 = pnand %p140, %p141
      %p143 = pneg %p142
      // Predicated region
      $region9: #{tpu_custom_call.1} parent=5 // pred_check
        _
      $region10: #{tpu_custom_call.1} parent=5 // pred_check_branch
        %145 = sbr.rel (%p142) target = $region12
      $region11: #{tpu_custom_call.1} parent=5 // pred_region
        %s146 = ssub.s32 %s17, 1
        // Predicated region
        $region13: #{tpu_custom_call.1} parent=11 // pred_check
          %p147 = pneg %p64
        $region14: #{tpu_custom_call.1} parent=11 // pred_check_branch
          %149 = sbr.rel (%p147) target = $region16
        $region15: #{tpu_custom_call.1} parent=11 // pred_region
          %151 = vsyncadd [#allocation6], 0
          %s152 = sshll.u32 %s1, 4
          %s153 = int_to_ptr.hbm [resolvable:$true] %s152
          %s154 = sshll.u32 [#allocation5], 4
          %s155 = int_to_ptr.vmem [resolvable:$true] %s154
          %160 = dma.hbm_to_vmem [thread:$0]  %s153, 256, %s155, [#allocation6], 128, 128, 8
        $region16: #{tpu_custom_call.1} parent=11 // pred_fallthru
          _
        // Predicated region
        $region17: #{tpu_custom_call.1} parent=11 // pred_check
          %p161 = pneg %p85
        $region18: #{tpu_custom_call.1} parent=11 // pred_check_branch
          %163 = sbr.rel (%p161) target = $region20
        $region19: #{tpu_custom_call.1} parent=11 // pred_region
          %165 = vsyncadd [#allocation6], 0
          %s166 = sshll.u32 %s2, 4
          %s167 = int_to_ptr.hbm [resolvable:$true] %s166
          %s168 = sshll.u32 [#allocation7], 4
          %s169 = int_to_ptr.vmem [resolvable:$true] %s168
          %174 = dma.hbm_to_vmem [thread:$0]  %s167, 2048, %s169, [#allocation6], 128, 128, 8
        $region20: #{tpu_custom_call.1} parent=11 // pred_fallthru
          _
        // Predicated region
        $region21: #{tpu_custom_call.1} parent=11 // pred_check
          %p175 = pneg %p106
        $region22: #{tpu_custom_call.1} parent=11 // pred_check_branch
          %177 = sbr.rel (%p175) target = $region24
        $region23: #{tpu_custom_call.1} parent=11 // pred_region
          _
        $region24: #{tpu_custom_call.1} parent=11 // pred_fallthru
          _
      $region12: #{tpu_custom_call.1} parent=5 // pred_fallthru
        _
      %p178 = scmp.lt.s32.totalorder %s17, 2
      // Predicated region
      $region25: #{tpu_custom_call.1} parent=5 // pred_check
        %p179 = pneg %p178
      $region26: #{tpu_custom_call.1} parent=5 // pred_check_branch
        %181 = sbr.rel (%p179) target = $region28
      $region27: #{tpu_custom_call.1} parent=5 // pred_region
        // Predicated region
        $region29: #{tpu_custom_call.1} parent=27 // pred_check
          %p182 = pneg %p37
        $region30: #{tpu_custom_call.1} parent=27 // pred_check_branch
          %184 = sbr.rel (%p182) target = $region32
        $region31: #{tpu_custom_call.1} parent=27 // pred_region
          %s185 = sand.u32 %s27, 1
          %s186 = scalar_lea.sflag [#allocation3], %s185
          %s187 = sand.u32 %s27, 1
          %s188 = smul.addr %s187, 128
          %s189 = scalar_lea.vmem [#allocation2], %s188
          %s190 = smul.u32 8, %s17
          %192 = vsyncadd %s186, 0
          %s193 = smul.addr %s190, 2
          %s194 = smul.addr %s193, 8
          %s195 = scalar_lea.hbm %s0, %s194
          %s196 = sshll.u32 %s195, 4
          %s197 = int_to_ptr.hbm [resolvable:$true] %s196
          %s198 = sshll.u32 %s189, 4
          %s199 = int_to_ptr.vmem [resolvable:$true] %s198
          %204 = dma.hbm_to_vmem [thread:$0]  %s197, 2048, %s199, %s186, 128, 128, 8
        $region32: #{tpu_custom_call.1} parent=27 // pred_fallthru
          _
      $region28: #{tpu_custom_call.1} parent=5 // pred_fallthru
        _
      %p205 = scmp.le.s32.totalorder 1, %s17
      %p206 = scmp.lt.s32.totalorder %s17, 3
      %p207 = pnand %p205, %p206
      %p208 = pneg %p207
      // Predicated region
      $region33: #{tpu_custom_call.1} parent=5 // pred_check
        _
      $region34: #{tpu_custom_call.1} parent=5 // pred_check_branch
        %210 = sbr.rel (%p207) target = $region36
      $region35: #{tpu_custom_call.1} parent=5 // pred_region
        %s211 = ssub.s32 %s17, 1
        %s212 = sand.u32 %s30, 1
        %s213 = scalar_lea.sflag [#allocation3], %s212
        %s214 = sand.u32 %s30, 1
        %s215 = smul.addr %s214, 128
        %s216 = scalar_lea.vmem [#allocation2], %s215
        // Predicated region
        $region37: #{tpu_custom_call.1} parent=35 // pred_check
          %p217 = pneg %p43
        $region38: #{tpu_custom_call.1} parent=35 // pred_check_branch
          %219 = sbr.rel (%p217) target = $region40
        $region39: #{tpu_custom_call.1} parent=35 // pred_region
          %221 = dma.done %s213, 2048
        $region40: #{tpu_custom_call.1} parent=35 // pred_fallthru
          _
        // Predicated region
        $region41: #{tpu_custom_call.1} parent=35 // pred_check
          %p222 = pneg %p64
        $region42: #{tpu_custom_call.1} parent=35 // pred_check_branch
          %224 = sbr.rel (%p222) target = $region44
        $region43: #{tpu_custom_call.1} parent=35 // pred_region
          %226 = dma.done [#allocation6], 256
        $region44: #{tpu_custom_call.1} parent=35 // pred_fallthru
          _
        // Predicated region
        $region45: #{tpu_custom_call.1} parent=35 // pred_check
          %p227 = pneg %p85
        $region46: #{tpu_custom_call.1} parent=35 // pred_check_branch
          %229 = sbr.rel (%p227) target = $region48
        $region47: #{tpu_custom_call.1} parent=35 // pred_region
          %231 = dma.done [#allocation6], 2048
        $region48: #{tpu_custom_call.1} parent=35 // pred_fallthru
          _
        %s232 = sand.u32 %s30, 1
        %s233 = scalar_lea.sflag [#allocation3], %s232
        %s234 = sand.u32 %s30, 1
        %s235 = smul.addr %s234, 128
        %s236 = scalar_lea.vmem [#allocation2], %s235
        %p237 = pneg %p43
        %p238 = pneg %p40
        %p239 = pneg %p64
        %p240 = pneg %p61
        %p241 = pneg %p85
        %p242 = pneg %p82
        %p243 = pneg %p106
        %p244 = pneg %p103
        %p245 = pneg %p132
        %p246 = pneg %p129
        %s247 = sand.u32 %s119, 1
        %s248 = scalar_lea.sflag [#allocation4], %s247
        %s249 = sand.u32 %s119, 1
        %s250 = smul.addr %s249, 8
        %s251 = scalar_lea.vmem [#allocation8], %s250
        %s252 = smul.u32 8, %s22
        %v253 = vld [vmem:[%s216] sm:$0xff]
        %v254 = vld [vmem:[%s216 + $0x8] sm:$0xff]
        %v255 = vld [vmem:[%s216 + $0x10] sm:$0xff]
        %v256 = vld [vmem:[%s216 + $0x18] sm:$0xff]
        %v257 = vld [vmem:[%s216 + $0x20] sm:$0xff]
        %v258 = vld [vmem:[%s216 + $0x28] sm:$0xff]
        %v259 = vld [vmem:[%s216 + $0x30] sm:$0xff]
        %v260 = vld [vmem:[%s216 + $0x38] sm:$0xff]
        %v261 = vld [vmem:[%s216 + $0x40] sm:$0xff]
        %v262 = vld [vmem:[%s216 + $0x48] sm:$0xff]
        %v263 = vld [vmem:[%s216 + $0x50] sm:$0xff]
        %v264 = vld [vmem:[%s216 + $0x58] sm:$0xff]
        %v265 = vld [vmem:[%s216 + $0x60] sm:$0xff]
        %v266 = vld [vmem:[%s216 + $0x68] sm:$0xff]
        %v267 = vld [vmem:[%s216 + $0x70] sm:$0xff]
        %v268 = vld [vmem:[%s216 + $0x78] sm:$0xff]
        %v269 = vld [vmem:[#allocation5] sm:$0xff]
        %v270 = vld [vmem:[#allocation5 + $0x8] sm:$0xff]
        %v271 = vmul.f32 %v253, 2.0
        %v272 = vmul.f32 %v254, 2.0
        %v273 = vmul.f32 %v255, 2.0
        %v274 = vmul.f32 %v256, 2.0
        %v275 = vmul.f32 %v257, 2.0
        %v276 = vmul.f32 %v258, 2.0
        %v277 = vmul.f32 %v259, 2.0
        %v278 = vmul.f32 %v260, 2.0
        %v279 = vmul.f32 %v261, 2.0
        %v280 = vmul.f32 %v262, 2.0
        %v281 = vmul.f32 %v263, 2.0
        %v282 = vmul.f32 %v264, 2.0
        %v283 = vmul.f32 %v265, 2.0
        %v284 = vmul.f32 %v266, 2.0
        %v285 = vmul.f32 %v267, 2.0
        %v286 = vmul.f32 %v268, 2.0
        %v287 = vadd.f32 %v271, %v269
        %v288 = vadd.f32 %v272, %v270
        %v289 = vadd.f32 %v273, %v269
        %v290 = vadd.f32 %v274, %v270
        %v291 = vadd.f32 %v275, %v269
        %v292 = vadd.f32 %v276, %v270
        %v293 = vadd.f32 %v277, %v269
        %v294 = vadd.f32 %v278, %v270
        %v295 = vadd.f32 %v279, %v269
        %v296 = vadd.f32 %v280, %v270
        %v297 = vadd.f32 %v281, %v269
        %v298 = vadd.f32 %v282, %v270
        %v299 = vadd.f32 %v283, %v269
        %v300 = vadd.f32 %v284, %v270
        %v301 = vadd.f32 %v285, %v269
        %v302 = vadd.f32 %v286, %v270
        %303 = vadd.xlane.f32.xlu0 %v287
        %v304 = vpop.xlane.xlu0 %303
        %305 = vadd.xlane.f32.xlu0 %v288
        %v306 = vpop.xlane.xlu0 %305
        %307 = vadd.xlane.f32.xlu0 %v289
        %v308 = vpop.xlane.xlu0 %307
        %309 = vadd.xlane.f32.xlu0 %v290
        %v310 = vpop.xlane.xlu0 %309
        %311 = vadd.xlane.f32.xlu0 %v291
        %v312 = vpop.xlane.xlu0 %311
        %313 = vadd.xlane.f32.xlu0 %v292
        %v314 = vpop.xlane.xlu0 %313
        %315 = vadd.xlane.f32.xlu0 %v293
        %v316 = vpop.xlane.xlu0 %315
        %317 = vadd.xlane.f32.xlu0 %v294
        %v318 = vpop.xlane.xlu0 %317
        %319 = vadd.xlane.f32.xlu0 %v295
        %v320 = vpop.xlane.xlu0 %319
        %321 = vadd.xlane.f32.xlu0 %v296
        %v322 = vpop.xlane.xlu0 %321
        %323 = vadd.xlane.f32.xlu0 %v297
        %v324 = vpop.xlane.xlu0 %323
        %325 = vadd.xlane.f32.xlu0 %v298
        %v326 = vpop.xlane.xlu0 %325
        %327 = vadd.xlane.f32.xlu0 %v299
        %v328 = vpop.xlane.xlu0 %327
        %329 = vadd.xlane.f32.xlu0 %v300
        %v330 = vpop.xlane.xlu0 %329
        %331 = vadd.xlane.f32.xlu0 %v301
        %v332 = vpop.xlane.xlu0 %331
        %333 = vadd.xlane.f32.xlu0 %v302
        %v334 = vpop.xlane.xlu0 %333
        %v335 = vmul.f32 %v304, 0.0078125
        %v336 = vmul.f32 %v306, 0.0078125
        %v337 = vmul.f32 %v308, 0.0078125
        %v338 = vmul.f32 %v310, 0.0078125
        %v339 = vmul.f32 %v312, 0.0078125
        %v340 = vmul.f32 %v314, 0.0078125
        %v341 = vmul.f32 %v316, 0.0078125
        %v342 = vmul.f32 %v318, 0.0078125
        %v343 = vmul.f32 %v320, 0.0078125
        %v344 = vmul.f32 %v322, 0.0078125
        %v345 = vmul.f32 %v324, 0.0078125
        %v346 = vmul.f32 %v326, 0.0078125
        %v347 = vmul.f32 %v328, 0.0078125
        %v348 = vmul.f32 %v330, 0.0078125
        %v349 = vmul.f32 %v332, 0.0078125
        %v350 = vmul.f32 %v334, 0.0078125
        %v351 = vmul.f32 %v287, %v287
        %v352 = vmul.f32 %v288, %v288
        %v353 = vmul.f32 %v289, %v289
        %v354 = vmul.f32 %v290, %v290
        %v355 = vmul.f32 %v291, %v291
        %v356 = vmul.f32 %v292, %v292
        %v357 = vmul.f32 %v293, %v293
        %v358 = vmul.f32 %v294, %v294
        %v359 = vmul.f32 %v295, %v295
        %v360 = vmul.f32 %v296, %v296
        %v361 = vmul.f32 %v297, %v297
        %v362 = vmul.f32 %v298, %v298
        %v363 = vmul.f32 %v299, %v299
        %v364 = vmul.f32 %v300, %v300
        %v365 = vmul.f32 %v301, %v301
        %v366 = vmul.f32 %v302, %v302
        %367 = vadd.xlane.f32.xlu0 %v351
        %v368 = vpop.xlane.xlu0 %367
        %369 = vadd.xlane.f32.xlu0 %v352
        %v370 = vpop.xlane.xlu0 %369
        %371 = vadd.xlane.f32.xlu0 %v353
        %v372 = vpop.xlane.xlu0 %371
        %373 = vadd.xlane.f32.xlu0 %v354
        %v374 = vpop.xlane.xlu0 %373
        %375 = vadd.xlane.f32.xlu0 %v355
        %v376 = vpop.xlane.xlu0 %375
        %377 = vadd.xlane.f32.xlu0 %v356
        %v378 = vpop.xlane.xlu0 %377
        %379 = vadd.xlane.f32.xlu0 %v357
        %v380 = vpop.xlane.xlu0 %379
        %381 = vadd.xlane.f32.xlu0 %v358
        %v382 = vpop.xlane.xlu0 %381
        %383 = vadd.xlane.f32.xlu0 %v359
        %v384 = vpop.xlane.xlu0 %383
        %385 = vadd.xlane.f32.xlu0 %v360
        %v386 = vpop.xlane.xlu0 %385
        %387 = vadd.xlane.f32.xlu0 %v361
        %v388 = vpop.xlane.xlu0 %387
        %389 = vadd.xlane.f32.xlu0 %v362
        %v390 = vpop.xlane.xlu0 %389
        %391 = vadd.xlane.f32.xlu0 %v363
        %v392 = vpop.xlane.xlu0 %391
        %393 = vadd.xlane.f32.xlu0 %v364
        %v394 = vpop.xlane.xlu0 %393
        %395 = vadd.xlane.f32.xlu0 %v365
        %v396 = vpop.xlane.xlu0 %395
        %397 = vadd.xlane.f32.xlu0 %v366
        %v398 = vpop.xlane.xlu0 %397
        %v399 = vmul.f32 %v368, 0.0078125
        %v400 = vmul.f32 %v370, 0.0078125
        %v401 = vmul.f32 %v372, 0.0078125
        %v402 = vmul.f32 %v374, 0.0078125
        %v403 = vmul.f32 %v376, 0.0078125
        %v404 = vmul.f32 %v378, 0.0078125
        %v405 = vmul.f32 %v380, 0.0078125
        %v406 = vmul.f32 %v382, 0.0078125
        %v407 = vmul.f32 %v384, 0.0078125
        %v408 = vmul.f32 %v386, 0.0078125
        %v409 = vmul.f32 %v388, 0.0078125
        %v410 = vmul.f32 %v390, 0.0078125
        %v411 = vmul.f32 %v392, 0.0078125
        %v412 = vmul.f32 %v394, 0.0078125
        %v413 = vmul.f32 %v396, 0.0078125
        %v414 = vmul.f32 %v398, 0.0078125
        %v415 = vmul.f32 %v335, %v335
        %v416 = vmul.f32 %v336, %v336
        %v417 = vmul.f32 %v337, %v337
        %v418 = vmul.f32 %v338, %v338
        %v419 = vmul.f32 %v339, %v339
        %v420 = vmul.f32 %v340, %v340
        %v421 = vmul.f32 %v341, %v341
        %v422 = vmul.f32 %v342, %v342
        %v423 = vmul.f32 %v343, %v343
        %v424 = vmul.f32 %v344, %v344
        %v425 = vmul.f32 %v345, %v345
        %v426 = vmul.f32 %v346, %v346
        %v427 = vmul.f32 %v347, %v347
        %v428 = vmul.f32 %v348, %v348
        %v429 = vmul.f32 %v349, %v349
        %v430 = vmul.f32 %v350, %v350
        %v431 = vsub.f32 %v399, %v415
        %v432 = vsub.f32 %v400, %v416
        %v433 = vsub.f32 %v401, %v417
        %v434 = vsub.f32 %v402, %v418
        %v435 = vsub.f32 %v403, %v419
        %v436 = vsub.f32 %v404, %v420
        %v437 = vsub.f32 %v405, %v421
        %v438 = vsub.f32 %v406, %v422
        %v439 = vsub.f32 %v407, %v423
        %v440 = vsub.f32 %v408, %v424
        %v441 = vsub.f32 %v409, %v425
        %v442 = vsub.f32 %v410, %v426
        %v443 = vsub.f32 %v411, %v427
        %v444 = vsub.f32 %v412, %v428
        %v445 = vsub.f32 %v413, %v429
        %v446 = vsub.f32 %v414, %v430
        %v447 = vmax.f32 %v431, 0.0
        %v448 = vmax.f32 %v432, 0.0
        %v449 = vmax.f32 %v433, 0.0
        %v450 = vmax.f32 %v434, 0.0
        %v451 = vmax.f32 %v435, 0.0
        %v452 = vmax.f32 %v436, 0.0
        %v453 = vmax.f32 %v437, 0.0
        %v454 = vmax.f32 %v438, 0.0
        %v455 = vmax.f32 %v439, 0.0
        %v456 = vmax.f32 %v440, 0.0
        %v457 = vmax.f32 %v441, 0.0
        %v458 = vmax.f32 %v442, 0.0
        %v459 = vmax.f32 %v443, 0.0
        %v460 = vmax.f32 %v444, 0.0
        %v461 = vmax.f32 %v445, 0.0
        %v462 = vmax.f32 %v446, 0.0
        %v463 = vadd.f32 %v447, 1e-12
        %v464 = vadd.f32 %v448, 1e-12
        %v465 = vadd.f32 %v449, 1e-12
        %v466 = vadd.f32 %v450, 1e-12
        %v467 = vadd.f32 %v451, 1e-12
        %v468 = vadd.f32 %v452, 1e-12
        %v469 = vadd.f32 %v453, 1e-12
        %v470 = vadd.f32 %v454, 1e-12
        %v471 = vadd.f32 %v455, 1e-12
        %v472 = vadd.f32 %v456, 1e-12
        %v473 = vadd.f32 %v457, 1e-12
        %v474 = vadd.f32 %v458, 1e-12
        %v475 = vadd.f32 %v459, 1e-12
        %v476 = vadd.f32 %v460, 1e-12
        %v477 = vadd.f32 %v461, 1e-12
        %v478 = vadd.f32 %v462, 1e-12
        %v479 = vrsqrt.pop %v463
        %v480 = vmul.f32 %v479, %v463
        %v481 = vmul.f32 %v480, %v479
        %v482 = vmul.f32 0.5, %v481
        %v483 = vsub.f32 1.5, %v482
        %v484 = vmul.f32 %v479, %v483
        %vm485 = vweird.f32 %v463
        %vm486 = vweird.f32 %v479
        %vm487 = vmor %vm485, %vm486
        %v488 = vsel %vm487, %v479, %v484
        %v489 = vrsqrt.pop %v464
        %v490 = vmul.f32 %v489, %v464
        %v491 = vmul.f32 %v490, %v489
        %v492 = vmul.f32 0.5, %v491
        %v493 = vsub.f32 1.5, %v492
        %v494 = vmul.f32 %v489, %v493
        %vm495 = vweird.f32 %v464
        %vm496 = vweird.f32 %v489
        %vm497 = vmor %vm495, %vm496
        %v498 = vsel %vm497, %v489, %v494
        %v499 = vrsqrt.pop %v465
        %v500 = vmul.f32 %v499, %v465
        %v501 = vmul.f32 %v500, %v499
        %v502 = vmul.f32 0.5, %v501
        %v503 = vsub.f32 1.5, %v502
        %v504 = vmul.f32 %v499, %v503
        %vm505 = vweird.f32 %v465
        %vm506 = vweird.f32 %v499
        %vm507 = vmor %vm505, %vm506
        %v508 = vsel %vm507, %v499, %v504
        %v509 = vrsqrt.pop %v466
        %v510 = vmul.f32 %v509, %v466
        %v511 = vmul.f32 %v510, %v509
        %v512 = vmul.f32 0.5, %v511
        %v513 = vsub.f32 1.5, %v512
        %v514 = vmul.f32 %v509, %v513
        %vm515 = vweird.f32 %v466
        %vm516 = vweird.f32 %v509
        %vm517 = vmor %vm515, %vm516
        %v518 = vsel %vm517, %v509, %v514
        %v519 = vrsqrt.pop %v467
        %v520 = vmul.f32 %v519, %v467
        %v521 = vmul.f32 %v520, %v519
        %v522 = vmul.f32 0.5, %v521
        %v523 = vsub.f32 1.5, %v522
        %v524 = vmul.f32 %v519, %v523
        %vm525 = vweird.f32 %v467
        %vm526 = vweird.f32 %v519
        %vm527 = vmor %vm525, %vm526
        %v528 = vsel %vm527, %v519, %v524
        %v529 = vrsqrt.pop %v468
        %v530 = vmul.f32 %v529, %v468
        %v531 = vmul.f32 %v530, %v529
        %v532 = vmul.f32 0.5, %v531
        %v533 = vsub.f32 1.5, %v532
        %v534 = vmul.f32 %v529, %v533
        %vm535 = vweird.f32 %v468
        %vm536 = vweird.f32 %v529
        %vm537 = vmor %vm535, %vm536
        %v538 = vsel %vm537, %v529, %v534
        %v539 = vrsqrt.pop %v469
        %v540 = vmul.f32 %v539, %v469
        %v541 = vmul.f32 %v540, %v539
        %v542 = vmul.f32 0.5, %v541
        %v543 = vsub.f32 1.5, %v542
        %v544 = vmul.f32 %v539, %v543
        %vm545 = vweird.f32 %v469
        %vm546 = vweird.f32 %v539
        %vm547 = vmor %vm545, %vm546
        %v548 = vsel %vm547, %v539, %v544
        %v549 = vrsqrt.pop %v470
        %v550 = vmul.f32 %v549, %v470
        %v551 = vmul.f32 %v550, %v549
        %v552 = vmul.f32 0.5, %v551
        %v553 = vsub.f32 1.5, %v552
        %v554 = vmul.f32 %v549, %v553
        %vm555 = vweird.f32 %v470
        %vm556 = vweird.f32 %v549
        %vm557 = vmor %vm555, %vm556
        %v558 = vsel %vm557, %v549, %v554
        %v559 = vrsqrt.pop %v471
        %v560 = vmul.f32 %v559, %v471
        %v561 = vmul.f32 %v560, %v559
        %v562 = vmul.f32 0.5, %v561
        %v563 = vsub.f32 1.5, %v562
        %v564 = vmul.f32 %v559, %v563
        %vm565 = vweird.f32 %v471
        %vm566 = vweird.f32 %v559
        %vm567 = vmor %vm565, %vm566
        %v568 = vsel %vm567, %v559, %v564
        %v569 = vrsqrt.pop %v472
        %v570 = vmul.f32 %v569, %v472
        %v571 = vmul.f32 %v570, %v569
        %v572 = vmul.f32 0.5, %v571
        %v573 = vsub.f32 1.5, %v572
        %v574 = vmul.f32 %v569, %v573
        %vm575 = vweird.f32 %v472
        %vm576 = vweird.f32 %v569
        %vm577 = vmor %vm575, %vm576
        %v578 = vsel %vm577, %v569, %v574
        %v579 = vrsqrt.pop %v473
        %v580 = vmul.f32 %v579, %v473
        %v581 = vmul.f32 %v580, %v579
        %v582 = vmul.f32 0.5, %v581
        %v583 = vsub.f32 1.5, %v582
        %v584 = vmul.f32 %v579, %v583
        %vm585 = vweird.f32 %v473
        %vm586 = vweird.f32 %v579
        %vm587 = vmor %vm585, %vm586
        %v588 = vsel %vm587, %v579, %v584
        %v589 = vrsqrt.pop %v474
        %v590 = vmul.f32 %v589, %v474
        %v591 = vmul.f32 %v590, %v589
        %v592 = vmul.f32 0.5, %v591
        %v593 = vsub.f32 1.5, %v592
        %v594 = vmul.f32 %v589, %v593
        %vm595 = vweird.f32 %v474
        %vm596 = vweird.f32 %v589
        %vm597 = vmor %vm595, %vm596
        %v598 = vsel %vm597, %v589, %v594
        %v599 = vrsqrt.pop %v475
        %v600 = vmul.f32 %v599, %v475
        %v601 = vmul.f32 %v600, %v599
        %v602 = vmul.f32 0.5, %v601
        %v603 = vsub.f32 1.5, %v602
        %v604 = vmul.f32 %v599, %v603
        %vm605 = vweird.f32 %v475
        %vm606 = vweird.f32 %v599
        %vm607 = vmor %vm605, %vm606
        %v608 = vsel %vm607, %v599, %v604
        %v609 = vrsqrt.pop %v476
        %v610 = vmul.f32 %v609, %v476
        %v611 = vmul.f32 %v610, %v609
        %v612 = vmul.f32 0.5, %v611
        %v613 = vsub.f32 1.5, %v612
        %v614 = vmul.f32 %v609, %v613
        %vm615 = vweird.f32 %v476
        %vm616 = vweird.f32 %v609
        %vm617 = vmor %vm615, %vm616
        %v618 = vsel %vm617, %v609, %v614
        %v619 = vrsqrt.pop %v477
        %v620 = vmul.f32 %v619, %v477
        %v621 = vmul.f32 %v620, %v619
        %v622 = vmul.f32 0.5, %v621
        %v623 = vsub.f32 1.5, %v622
        %v624 = vmul.f32 %v619, %v623
        %vm625 = vweird.f32 %v477
        %vm626 = vweird.f32 %v619
        %vm627 = vmor %vm625, %vm626
        %v628 = vsel %vm627, %v619, %v624
        %v629 = vrsqrt.pop %v478
        %v630 = vmul.f32 %v629, %v478
        %v631 = vmul.f32 %v630, %v629
        %v632 = vmul.f32 0.5, %v631
        %v633 = vsub.f32 1.5, %v632
        %v634 = vmul.f32 %v629, %v633
        %vm635 = vweird.f32 %v478
        %vm636 = vweird.f32 %v629
        %vm637 = vmor %vm635, %vm636
        %v638 = vsel %vm637, %v629, %v634
        %v639 = vmul.f32 %v287, %v488
        %v640 = vmul.f32 %v288, %v498
        %v641 = vmul.f32 %v289, %v508
        %v642 = vmul.f32 %v290, %v518
        %v643 = vmul.f32 %v291, %v528
        %v644 = vmul.f32 %v292, %v538
        %v645 = vmul.f32 %v293, %v548
        %v646 = vmul.f32 %v294, %v558
        %v647 = vmul.f32 %v295, %v568
        %v648 = vmul.f32 %v296, %v578
        %v649 = vmul.f32 %v297, %v588
        %v650 = vmul.f32 %v298, %v598
        %v651 = vmul.f32 %v299, %v608
        %v652 = vmul.f32 %v300, %v618
        %v653 = vmul.f32 %v301, %v628
        %v654 = vmul.f32 %v302, %v638
        %v655 = vadd.f32 %v639, %v640
        %v656 = vrot.slane %v655, 4
        %v657 = vadd.f32 %v655, %v656
        %v658 = vrot.slane %v657, 2
        %v659 = vadd.f32 %v657, %v658
        %v660 = vrot.slane %v659, 1
        %v661 = vadd.f32 %v659, %v660
        %v662 = vadd.f32 %v641, %v642
        %v663 = vrot.slane %v662, 4
        %v664 = vadd.f32 %v662, %v663
        %v665 = vrot.slane %v664, 2
        %v666 = vadd.f32 %v664, %v665
        %v667 = vrot.slane %v666, 1
        %v668 = vadd.f32 %v666, %v667
        %v669 = vadd.f32 %v643, %v644
        %v670 = vrot.slane %v669, 4
        %v671 = vadd.f32 %v669, %v670
        %v672 = vrot.slane %v671, 2
        %v673 = vadd.f32 %v671, %v672
        %v674 = vrot.slane %v673, 1
        %v675 = vadd.f32 %v673, %v674
        %v676 = vadd.f32 %v645, %v646
        %v677 = vrot.slane %v676, 4
        %v678 = vadd.f32 %v676, %v677
        %v679 = vrot.slane %v678, 2
        %v680 = vadd.f32 %v678, %v679
        %v681 = vrot.slane %v680, 1
        %v682 = vadd.f32 %v680, %v681
        %v683 = vadd.f32 %v647, %v648
        %v684 = vrot.slane %v683, 4
        %v685 = vadd.f32 %v683, %v684
        %v686 = vrot.slane %v685, 2
        %v687 = vadd.f32 %v685, %v686
        %v688 = vrot.slane %v687, 1
        %v689 = vadd.f32 %v687, %v688
        %v690 = vadd.f32 %v649, %v650
        %v691 = vrot.slane %v690, 4
        %v692 = vadd.f32 %v690, %v691
        %v693 = vrot.slane %v692, 2
        %v694 = vadd.f32 %v692, %v693
        %v695 = vrot.slane %v694, 1
        %v696 = vadd.f32 %v694, %v695
        %v697 = vadd.f32 %v651, %v652
        %v698 = vrot.slane %v697, 4
        %v699 = vadd.f32 %v697, %v698
        %v700 = vrot.slane %v699, 2
        %v701 = vadd.f32 %v699, %v700
        %v702 = vrot.slane %v701, 1
        %v703 = vadd.f32 %v701, %v702
        %v704 = vadd.f32 %v653, %v654
        %v705 = vrot.slane %v704, 4
        %v706 = vadd.f32 %v704, %v705
        %v707 = vrot.slane %v706, 2
        %v708 = vadd.f32 %v706, %v707
        %v709 = vrot.slane %v708, 1
        %v710 = vadd.f32 %v708, %v709
        %v711 = vmul.f32 %v335, %v488
        %v712 = vmul.f32 %v336, %v498
        %v713 = vmul.f32 %v337, %v508
        %v714 = vmul.f32 %v338, %v518
        %v715 = vmul.f32 %v339, %v528
        %v716 = vmul.f32 %v340, %v538
        %v717 = vmul.f32 %v341, %v548
        %v718 = vmul.f32 %v342, %v558
        %v719 = vmul.f32 %v343, %v568
        %v720 = vmul.f32 %v344, %v578
        %v721 = vmul.f32 %v345, %v588
        %v722 = vmul.f32 %v346, %v598
        %v723 = vmul.f32 %v347, %v608
        %v724 = vmul.f32 %v348, %v618
        %v725 = vmul.f32 %v349, %v628
        %v726 = vmul.f32 %v350, %v638
        %v727 = vadd.f32 %v711, %v712
        %v728 = vrot.slane %v727, 4
        %v729 = vadd.f32 %v727, %v728
        %v730 = vrot.slane %v729, 2
        %v731 = vadd.f32 %v729, %v730
        %v732 = vrot.slane %v731, 1
        %v733 = vadd.f32 %v731, %v732
        %v734 = vadd.f32 %v713, %v714
        %v735 = vrot.slane %v734, 4
        %v736 = vadd.f32 %v734, %v735
        %v737 = vrot.slane %v736, 2
        %v738 = vadd.f32 %v736, %v737
        %v739 = vrot.slane %v738, 1
        %v740 = vadd.f32 %v738, %v739
        %v741 = vadd.f32 %v715, %v716
        %v742 = vrot.slane %v741, 4
        %v743 = vadd.f32 %v741, %v742
        %v744 = vrot.slane %v743, 2
        %v745 = vadd.f32 %v743, %v744
        %v746 = vrot.slane %v745, 1
        %v747 = vadd.f32 %v745, %v746
        %v748 = vadd.f32 %v717, %v718
        %v749 = vrot.slane %v748, 4
        %v750 = vadd.f32 %v748, %v749
        %v751 = vrot.slane %v750, 2
        %v752 = vadd.f32 %v750, %v751
        %v753 = vrot.slane %v752, 1
        %v754 = vadd.f32 %v752, %v753
        %v755 = vadd.f32 %v719, %v720
        %v756 = vrot.slane %v755, 4
        %v757 = vadd.f32 %v755, %v756
        %v758 = vrot.slane %v757, 2
        %v759 = vadd.f32 %v757, %v758
        %v760 = vrot.slane %v759, 1
        %v761 = vadd.f32 %v759, %v760
        %v762 = vadd.f32 %v721, %v722
        %v763 = vrot.slane %v762, 4
        %v764 = vadd.f32 %v762, %v763
        %v765 = vrot.slane %v764, 2
        %v766 = vadd.f32 %v764, %v765
        %v767 = vrot.slane %v766, 1
        %v768 = vadd.f32 %v766, %v767
        %v769 = vadd.f32 %v723, %v724
        %v770 = vrot.slane %v769, 4
        %v771 = vadd.f32 %v769, %v770
        %v772 = vrot.slane %v771, 2
        %v773 = vadd.f32 %v771, %v772
        %v774 = vrot.slane %v773, 1
        %v775 = vadd.f32 %v773, %v774
        %v776 = vadd.f32 %v725, %v726
        %v777 = vrot.slane %v776, 4
        %v778 = vadd.f32 %v776, %v777
        %v779 = vrot.slane %v778, 2
        %v780 = vadd.f32 %v778, %v779
        %v781 = vrot.slane %v780, 1
        %v782 = vadd.f32 %v780, %v781
        %v783 = vld [vmem:[%s3] sm:$0x3]
        %v784 = vld [vmem:[#allocation7] sm:$0xff]
        %v785 = vld [vmem:[#allocation7 + $0x8] sm:$0xff]
        %v786 = vld [vmem:[#allocation7 + $0x10] sm:$0xff]
        %v787 = vld [vmem:[#allocation7 + $0x18] sm:$0xff]
        %v788 = vld [vmem:[#allocation7 + $0x20] sm:$0xff]
        %v789 = vld [vmem:[#allocation7 + $0x28] sm:$0xff]
        %v790 = vld [vmem:[#allocation7 + $0x30] sm:$0xff]
        %v791 = vld [vmem:[#allocation7 + $0x38] sm:$0xff]
        %v792 = vld [vmem:[#allocation7 + $0x40] sm:$0xff]
        %v793 = vld [vmem:[#allocation7 + $0x48] sm:$0xff]
        %v794 = vld [vmem:[#allocation7 + $0x50] sm:$0xff]
        %v795 = vld [vmem:[#allocation7 + $0x58] sm:$0xff]
        %v796 = vld [vmem:[#allocation7 + $0x60] sm:$0xff]
        %v797 = vld [vmem:[#allocation7 + $0x68] sm:$0xff]
        %v798 = vld [vmem:[#allocation7 + $0x70] sm:$0xff]
        %v799 = vld [vmem:[#allocation7 + $0x78] sm:$0xff]
        %v800 = vperm.slane %v783, 0
        %vm809 = vcmask 1041409
        %v810 = vsel %vm809, %v668, %v661
        %vm811 = vcmask 1042434
        %v812 = vsel %vm811, %v675, %v810
        %vm813 = vcmask 1043459
        %v814 = vsel %vm813, %v682, %v812
        %vm815 = vcmask 1044484
        %v816 = vsel %vm815, %v689, %v814
        %vm817 = vcmask 1045509
        %v818 = vsel %vm817, %v696, %v816
        %vm819 = vcmask 1046534
        %v820 = vsel %vm819, %v703, %v818
        %vm821 = vcmask 1047559
        %v822 = vsel %vm821, %v710, %v820
        %824 = vmatpush.msra.mxu0 %v799
        %825 = vmatpush.msra.mxu0 %v798
        %826 = vmatpush.msra.mxu0 %v797
        %827 = vmatpush.msra.mxu0 %v796
        %828 = vmatpush.msra.mxu0 %v795
        %829 = vmatpush.msra.mxu0 %v794
        %830 = vmatpush.msra.mxu0 %v793
        %831 = vmatpush.msra.mxu0 %v792
        %832 = vmatpush.msra.mxu0 %v791
        %833 = vmatpush.msra.mxu0 %v790
        %834 = vmatpush.msra.mxu0 %v789
        %835 = vmatpush.msra.mxu0 %v788
        %836 = vmatpush.msra.mxu0 %v787
        %837 = vmatpush.msra.mxu0 %v786
        %838 = vmatpush.msra.mxu0 %v785
        %839 = vmatpush.msra.mxu0 %v784
        %840 = vmatmul.f32.gmra.mxu0 %v822
        %v841 = vpop.f32.mrf.mxu0
        %v842 = vadd.f32 %v800, %v841
        %843 = vdwg.mxu0
        %v844 = vperm.slane %v783, 1
        %v845 = vmul.f32 %v733, %v844
        %v846 = vmul.f32 %v740, %v844
        %v847 = vmul.f32 %v747, %v844
        %v848 = vmul.f32 %v754, %v844
        %v849 = vmul.f32 %v761, %v844
        %v850 = vmul.f32 %v768, %v844
        %v851 = vmul.f32 %v775, %v844
        %v852 = vmul.f32 %v782, %v844
        %v861 = vrot.slane %v846, 7
        %v862 = vsel %vm809, %v861, %v845
        %v863 = vrot.slane %v847, 6
        %v864 = vsel %vm811, %v863, %v862
        %v865 = vrot.slane %v848, 5
        %v866 = vsel %vm813, %v865, %v864
        %v867 = vrot.slane %v849, 4
        %v868 = vsel %vm815, %v867, %v866
        %v869 = vrot.slane %v850, 3
        %v870 = vsel %vm817, %v869, %v868
        %v871 = vrot.slane %v851, 2
        %v872 = vsel %vm819, %v871, %v870
        %v873 = vrot.slane %v852, 1
        %v874 = vsel %vm821, %v873, %v872
        %v876 = vsub.f32 %v842, %v874
        %v877 = vmax.f32 %v876, 0.0
        %878 = vst [vmem:[%s251] sm:$0xff] %v877
        %s879 = sand.u32 %s119, 1
        %s880 = scalar_lea.sflag [#allocation4], %s879
        %s881 = sand.u32 %s119, 1
        %s882 = smul.addr %s881, 8
        %s883 = scalar_lea.vmem [#allocation8], %s882
        // Predicated region
        $region49: #{tpu_custom_call.1} parent=35 // pred_check
          %p884 = pneg %p129
        $region50: #{tpu_custom_call.1} parent=35 // pred_check_branch
          %886 = sbr.rel (%p884) target = $region52
        $region51: #{tpu_custom_call.1} parent=35 // pred_region
          %888 = vsyncadd %s880, 0
          %s889 = smul.addr %s22, 8
          %s890 = scalar_lea.hbm %s4, %s889
          %s892 = sshll.u32 %s883, 4
          %s893 = int_to_ptr.vmem [resolvable:$true] %s892
          %s894 = sshll.u32 %s890, 4
          %s895 = int_to_ptr.hbm [resolvable:$true] %s894
          %897 = dma.vmem_to_hbm [thread:$0]  %s893, 128, %s895, %s880
        $region52: #{tpu_custom_call.1} parent=35 // pred_fallthru
          _
      $region36: #{tpu_custom_call.1} parent=5 // pred_fallthru
        _
      %p898 = scmp.le.s32.totalorder 2, %s17
      // Predicated region
      $region53: #{tpu_custom_call.1} parent=5 // pred_check
        %p899 = pneg %p898
      $region54: #{tpu_custom_call.1} parent=5 // pred_check_branch
        %901 = sbr.rel (%p899) target = $region56
      $region55: #{tpu_custom_call.1} parent=5 // pred_region
        %s902 = ssub.s32 %s17, 2
        // Predicated region
        $region57: #{tpu_custom_call.1} parent=55 // pred_check
          %p903 = pneg %p135
        $region58: #{tpu_custom_call.1} parent=55 // pred_check_branch
          %905 = sbr.rel (%p903) target = $region60
        $region59: #{tpu_custom_call.1} parent=55 // pred_region
          %s906 = sand.u32 %s120, 1
          %s907 = scalar_lea.sflag [#allocation4], %s906
          %s908 = sand.u32 %s120, 1
          %s909 = smul.addr %s908, 8
          %s910 = scalar_lea.vmem [#allocation8], %s909
          %912 = dma.done %s907, 128
        $region60: #{tpu_custom_call.1} parent=55 // pred_fallthru
          _
      $region56: #{tpu_custom_call.1} parent=5 // pred_fallthru
        _
    $region6: #{tpu_custom_call.1} parent=1 // loop_footer
      %s21 = sadd.s32 1, %s17
    $region7: #{tpu_custom_call.1} parent=1 // loop_footer_branch
      %16 = sbr.rel target = $region3
    $region8: #{tpu_custom_call.1} parent=1 // loop_exit
      _
    %913 = vsyncpa [#allocation3], 1
    %s914 = scalar_lea.sflag [#allocation3], 1
    %915 = vsyncpa %s914, 1
    %916 = vsyncpa [#allocation6], 1
    %917 = vsyncpa [#allocation4], 1
    %s918 = scalar_lea.sflag [#allocation4], 1
    %919 = vsyncpa %s918, 1

// kernel: tpu_custom_call.1
$region0: #{tpu_custom_call.1}
  #allocation0 [shape = 'u32[]', space=smem, size = 0x4, offset = 0x4, fixed_abs, tag = 'smem constant byte address 0x4 - core index']
  #allocation1 [shape = 'u32[72,128]{1,0:T(1,128)}', space=vmem, size = 0x9000, scoped, tag = 'internal scratch']
  %s0 = inlined_call_operand.hbm [shape: f32[16,16,128], index: 0, kind: input, shape index: {}]
  %s1 = inlined_call_operand.hbm [shape: f32[16,128], index: 1, kind: input, shape index: {}]
  %s2 = inlined_call_operand.hbm [shape: f32[128,128], index: 2, kind: input, shape index: {}]
  %s3 = inlined_call_operand.vmem [shape: f32[2,128], index: 3, kind: input, shape index: {}]
  %s4 = inlined_call_operand.hbm [shape: f32[16,128], index: 4, kind: output, shape index: {}]
  %s5 = sld [smem:[#allocation0]]
  $region61: #{tpu_custom_call.1} parent=0
    _
  %s7 = ssub.s32 1, %s5
  %s8 = scalar_select 0, %s7, %s5
  $region1: #{tpu_custom_call.1} parent=0
    #allocation2 [shape = 'u8[131072]{0}', space=vmem, size = 0x20000, scoped, tag = 'input window, operand 0']
    #allocation3 [shape = 's32[2]{0}', space=sflag, size = 0x8, scoped, tag = 'scoped memory for tpu_custom_call.1']
    #allocation4 [shape = 's32[2]{0}', space=sflag, size = 0x8, scoped, tag = 'scoped memory for tpu_custom_call.1']
    #allocation5 [shape = 'u8[8192]{0}', space=vmem, size = 0x2000, scoped, tag = 'input window, operand 1, single buffered']
    #allocation6 [shape = 's32[1]{0}', space=sflag, size = 0x4, scoped, tag = 'scoped memory for tpu_custom_call.1']
    #allocation7 [shape = 'u8[65536]{0}', space=vmem, size = 0x10000, scoped, tag = 'input window, operand 2, single buffered']
    #allocation8 [shape = 'u8[8192]{0}', space=vmem, size = 0x2000, scoped, tag = 'output window, operand 0']
    %9 = vsyncpa [#allocation3], 0
    %s10 = scalar_lea.sflag [#allocation3], 1
    %11 = vsyncpa %s10, 0
    %12 = vsyncpa [#allocation6], 0
    %13 = vsyncpa [#allocation4], 0
    %s14 = scalar_lea.sflag [#allocation4], 1
    %15 = vsyncpa %s14, 0
    loop: start=0, step=1, limit=4
    $region2: #{tpu_custom_call.1} parent=1 // loop_pre_header
      _
    $region3: #{tpu_custom_call.1} parent=1 // loop_header
      %s17 = sphi 0, %s21
      %p18 = scmp.ge.s32.totalorder %s17, 4
      %s27 = sphi 0, %s29
      %s30 = sphi 0, %s27
      %s31 = sphi 0, %s30
      %s47 = sphi 0, %s31
      %s51 = sphi 0, %s51
      %s53 = sphi 0, %s51
      %s54 = sphi 0, %s53
      %s68 = sphi 0, %s54
      %s72 = sphi 0, %s72
      %s74 = sphi 0, %s72
      %s75 = sphi 0, %s74
      %s89 = sphi 0, %s75
      %s93 = sphi 0, %s93
      %s95 = sphi 0, %s93
      %s96 = sphi 0, %s95
      %s110 = sphi 0, %s96
      %s116 = sphi 0, %s118
      %s119 = sphi 0, %s116
      %s120 = sphi 0, %s119
      %s136 = sphi 0, %s120
    $region4: #{tpu_custom_call.1} parent=1 // loop_header_branch
      %20 = sbr.rel (%p18) target = $region8
    $region5: #{tpu_custom_call.1} parent=1 // loop_body
      %s22 = ssub.s32 %s17, 1
      %s23 = ssub.s32 %s17, 2
      %s24 = sadd.s32 %s17, 1
      %s25 = ssub.s32 %s17, %s24
      %p26 = scmp.eq.s32.totalorder %s25, 0
      %s28 = sadd.s32 %s27, 1
      %s29 = scalar_select %p26, %s27, %s28
      %p32 = pneg %p26
      %p33 = scmp.eq.s32.totalorder %s17, 1
      %p34 = por %p32, %p33
      %p35 = scmp.ne.s32.totalorder %s27, %s30
      %p36 = scmp.eq.s32.totalorder %s17, 0
      %p37 = por %p35, %p36
      %p38 = scmp.ne.s32.totalorder %s27, %s30
      %p39 = scmp.eq.s32.totalorder %s22, 1
      %p40 = por %p38, %p39
      %p41 = scmp.ne.s32.totalorder %s30, %s31
      %p42 = scmp.eq.s32.totalorder %s22, 0
      %p43 = por %p41, %p42
      %p44 = scmp.ne.s32.totalorder %s30, %s31
      %p45 = scmp.eq.s32.totalorder %s23, 1
      %p46 = por %p44, %p45
      %p48 = scmp.ne.s32.totalorder %s31, %s47
      %p49 = scmp.eq.s32.totalorder %s23, 0
      %p50 = por %p48, %p49
      %s52 = sadd.s32 %s51, 1
      %p55 = scmp.eq.s32.totalorder %s17, 1
      %p56 = scmp.ne.s32.totalorder %s51, %s53
      %p57 = scmp.eq.s32.totalorder %s17, 0
      %p58 = por %p56, %p57
      %p59 = scmp.ne.s32.totalorder %s51, %s53
      %p60 = scmp.eq.s32.totalorder %s22, 1
      %p61 = por %p59, %p60
      %p62 = scmp.ne.s32.totalorder %s53, %s54
      %p63 = scmp.eq.s32.totalorder %s22, 0
      %p64 = por %p62, %p63
      %p65 = scmp.ne.s32.totalorder %s53, %s54
      %p66 = scmp.eq.s32.totalorder %s23, 1
      %p67 = por %p65, %p66
      %p69 = scmp.ne.s32.totalorder %s54, %s68
      %p70 = scmp.eq.s32.totalorder %s23, 0
      %p71 = por %p69, %p70
      %s73 = sadd.s32 %s72, 1
      %p76 = scmp.eq.s32.totalorder %s17, 1
      %p77 = scmp.ne.s32.totalorder %s72, %s74
      %p78 = scmp.eq.s32.totalorder %s17, 0
      %p79 = por %p77, %p78
      %p80 = scmp.ne.s32.totalorder %s72, %s74
      %p81 = scmp.eq.s32.totalorder %s22, 1
      %p82 = por %p80, %p81
      %p83 = scmp.ne.s32.totalorder %s74, %s75
      %p84 = scmp.eq.s32.totalorder %s22, 0
      %p85 = por %p83, %p84
      %p86 = scmp.ne.s32.totalorder %s74, %s75
      %p87 = scmp.eq.s32.totalorder %s23, 1
      %p88 = por %p86, %p87
      %p90 = scmp.ne.s32.totalorder %s75, %s89
      %p91 = scmp.eq.s32.totalorder %s23, 0
      %p92 = por %p90, %p91
      %s94 = sadd.s32 %s93, 1
      %p97 = scmp.eq.s32.totalorder %s17, 1
      %p98 = scmp.ne.s32.totalorder %s93, %s95
      %p99 = scmp.eq.s32.totalorder %s17, 0
      %p100 = por %p98, %p99
      %p101 = scmp.ne.s32.totalorder %s93, %s95
      %p102 = scmp.eq.s32.totalorder %s22, 1
      %p103 = por %p101, %p102
      %p104 = scmp.ne.s32.totalorder %s95, %s96
      %p105 = scmp.eq.s32.totalorder %s22, 0
      %p106 = por %p104, %p105
      %p107 = scmp.ne.s32.totalorder %s95, %s96
      %p108 = scmp.eq.s32.totalorder %s23, 1
      %p109 = por %p107, %p108
      %p111 = scmp.ne.s32.totalorder %s96, %s110
      %p112 = scmp.eq.s32.totalorder %s23, 0
      %p113 = por %p111, %p112
      %s114 = ssub.s32 %s17, %s24
      %p115 = scmp.eq.s32.totalorder %s114, 0
      %s117 = sadd.s32 %s116, 1
      %s118 = scalar_select %p115, %s116, %s117
      %p121 = pneg %p115
      %p122 = scmp.eq.s32.totalorder %s17, 1
      %p123 = por %p121, %p122
      %p124 = scmp.ne.s32.totalorder %s116, %s119
      %p125 = scmp.eq.s32.totalorder %s17, 0
      %p126 = por %p124, %p125
      %p127 = scmp.ne.s32.totalorder %s116, %s119
      %p128 = scmp.eq.s32.totalorder %s22, 1
      %p129 = por %p127, %p128
      %p130 = scmp.ne.s32.totalorder %s119, %s120
      %p131 = scmp.eq.s32.totalorder %s22, 0
      %p132 = por %p130, %p131
      %p133 = scmp.ne.s32.totalorder %s119, %s120
      %p134 = scmp.eq.s32.totalorder %s23, 1
      %p135 = por %p133, %p134
      %p137 = scmp.ne.s32.totalorder %s120, %s136
      %p138 = scmp.eq.s32.totalorder %s23, 0
      %p139 = por %p137, %p138
      %p140 = scmp.le.s32.totalorder 1, %s17
      %p141 = scmp.lt.s32.totalorder %s17, 3
      %p142 = pnand %p140, %p141
      %p143 = pneg %p142
      // Predicated region
      $region9: #{tpu_custom_call.1} parent=5 // pred_check
        _
      $region10: #{tpu_custom_call.1} parent=5 // pred_check_branch
        %145 = sbr.rel (%p142) target = $region12
      $region11: #{tpu_custom_call.1} parent=5 // pred_region
        %s146 = ssub.s32 %s17, 1
        // Predicated region
        $region13: #{tpu_custom_call.1} parent=11 // pred_check
          %p147 = pneg %p64
        $region14: #{tpu_custom_call.1} parent=11 // pred_check_branch
          %149 = sbr.rel (%p147) target = $region16
        $region15: #{tpu_custom_call.1} parent=11 // pred_region
          %151 = vsyncadd [#allocation6], 0
          %s152 = sshll.u32 %s1, 4
          %s153 = int_to_ptr.hbm [resolvable:$true] %s152
          %s154 = sshll.u32 [#allocation5], 4
          %s155 = int_to_ptr.vmem [resolvable:$true] %s154
          %160 = dma.hbm_to_vmem [thread:$0]  %s153, 256, %s155, [#allocation6], 128, 128, 8
        $region16: #{tpu_custom_call.1} parent=11 // pred_fallthru
          _
        // Predicated region
        $region17: #{tpu_custom_call.1} parent=11 // pred_check
          %p161 = pneg %p85
        $region18: #{tpu_custom_call.1} parent=11 // pred_check_branch
          %163 = sbr.rel (%p161) target = $region20
        $region19: #{tpu_custom_call.1} parent=11 // pred_region
          %165 = vsyncadd [#allocation6], 0
          %s166 = sshll.u32 %s2, 4
          %s167 = int_to_ptr.hbm [resolvable:$true] %s166
          %s168 = sshll.u32 [#allocation7], 4
          %s169 = int_to_ptr.vmem [resolvable:$true] %s168
          %174 = dma.hbm_to_vmem [thread:$0]  %s167, 2048, %s169, [#allocation6], 128, 128, 8
        $region20: #{tpu_custom_call.1} parent=11 // pred_fallthru
          _
        // Predicated region
        $region21: #{tpu_custom_call.1} parent=11 // pred_check
          %p175 = pneg %p106
        $region22: #{tpu_custom_call.1} parent=11 // pred_check_branch
          %177 = sbr.rel (%p175) target = $region24
        $region23: #{tpu_custom_call.1} parent=11 // pred_region
          _
        $region24: #{tpu_custom_call.1} parent=11 // pred_fallthru
          _
      $region12: #{tpu_custom_call.1} parent=5 // pred_fallthru
        _
      %p178 = scmp.lt.s32.totalorder %s17, 2
      // Predicated region
      $region25: #{tpu_custom_call.1} parent=5 // pred_check
        %p179 = pneg %p178
      $region26: #{tpu_custom_call.1} parent=5 // pred_check_branch
        %181 = sbr.rel (%p179) target = $region28
      $region27: #{tpu_custom_call.1} parent=5 // pred_region
        // Predicated region
        $region29: #{tpu_custom_call.1} parent=27 // pred_check
          %p182 = pneg %p37
        $region30: #{tpu_custom_call.1} parent=27 // pred_check_branch
          %184 = sbr.rel (%p182) target = $region32
        $region31: #{tpu_custom_call.1} parent=27 // pred_region
          %s185 = sand.u32 %s27, 1
          %s186 = scalar_lea.sflag [#allocation3], %s185
          %s187 = sand.u32 %s27, 1
          %s188 = smul.addr %s187, 128
          %s189 = scalar_lea.vmem [#allocation2], %s188
          %s190 = smul.u32 8, %s17
          %192 = vsyncadd %s186, 0
          %s193 = smul.addr %s190, 2
          %s194 = smul.addr %s193, 8
          %s195 = scalar_lea.hbm %s0, %s194
          %s196 = sshll.u32 %s195, 4
          %s197 = int_to_ptr.hbm [resolvable:$true] %s196
          %s198 = sshll.u32 %s189, 4
          %s199 = int_to_ptr.vmem [resolvable:$true] %s198
          %204 = dma.hbm_to_vmem [thread:$0]  %s197, 2048, %s199, %s186, 128, 128, 8
        $region32: #{tpu_custom_call.1} parent=27 // pred_fallthru
          _
      $region28: #{tpu_custom_call.1} parent=5 // pred_fallthru
        _
      %p205 = scmp.le.s32.totalorder 1, %s17
      %p206 = scmp.lt.s32.totalorder %s17, 3
      %p207 = pnand %p205, %p206
      %p208 = pneg %p207
      // Predicated region
      $region33: #{tpu_custom_call.1} parent=5 // pred_check
        _
      $region34: #{tpu_custom_call.1} parent=5 // pred_check_branch
        %210 = sbr.rel (%p207) target = $region36
      $region35: #{tpu_custom_call.1} parent=5 // pred_region
        %s211 = ssub.s32 %s17, 1
        %s212 = sand.u32 %s30, 1
        %s213 = scalar_lea.sflag [#allocation3], %s212
        %s214 = sand.u32 %s30, 1
        %s215 = smul.addr %s214, 128
        %s216 = scalar_lea.vmem [#allocation2], %s215
        // Predicated region
        $region37: #{tpu_custom_call.1} parent=35 // pred_check
          %p217 = pneg %p43
        $region38: #{tpu_custom_call.1} parent=35 // pred_check_branch
          %219 = sbr.rel (%p217) target = $region40
        $region39: #{tpu_custom_call.1} parent=35 // pred_region
          %221 = dma.done %s213, 2048
        $region40: #{tpu_custom_call.1} parent=35 // pred_fallthru
          _
        // Predicated region
        $region41: #{tpu_custom_call.1} parent=35 // pred_check
          %p222 = pneg %p64
        $region42: #{tpu_custom_call.1} parent=35 // pred_check_branch
          %224 = sbr.rel (%p222) target = $region44
        $region43: #{tpu_custom_call.1} parent=35 // pred_region
          %226 = dma.done [#allocation6], 256
        $region44: #{tpu_custom_call.1} parent=35 // pred_fallthru
          _
        // Predicated region
        $region45: #{tpu_custom_call.1} parent=35 // pred_check
          %p227 = pneg %p85
        $region46: #{tpu_custom_call.1} parent=35 // pred_check_branch
          %229 = sbr.rel (%p227) target = $region48
        $region47: #{tpu_custom_call.1} parent=35 // pred_region
          %231 = dma.done [#allocation6], 2048
        $region48: #{tpu_custom_call.1} parent=35 // pred_fallthru
          _
        %s232 = sand.u32 %s30, 1
        %s233 = scalar_lea.sflag [#allocation3], %s232
        %s234 = sand.u32 %s30, 1
        %s235 = smul.addr %s234, 128
        %s236 = scalar_lea.vmem [#allocation2], %s235
        %p237 = pneg %p43
        %p238 = pneg %p40
        %p239 = pneg %p64
        %p240 = pneg %p61
        %p241 = pneg %p85
        %p242 = pneg %p82
        %p243 = pneg %p106
        %p244 = pneg %p103
        %p245 = pneg %p132
        %p246 = pneg %p129
        %s247 = sand.u32 %s119, 1
        %s248 = scalar_lea.sflag [#allocation4], %s247
        %s249 = sand.u32 %s119, 1
        %s250 = smul.addr %s249, 8
        %s251 = scalar_lea.vmem [#allocation8], %s250
        %s252 = smul.u32 8, %s22
        %v253 = vld [vmem:[%s216] sm:$0xff]
        %v254 = vld [vmem:[%s216 + $0x8] sm:$0xff]
        %v255 = vld [vmem:[%s216 + $0x10] sm:$0xff]
        %v256 = vld [vmem:[%s216 + $0x18] sm:$0xff]
        %v257 = vld [vmem:[%s216 + $0x20] sm:$0xff]
        %v258 = vld [vmem:[%s216 + $0x28] sm:$0xff]
        %v259 = vld [vmem:[%s216 + $0x30] sm:$0xff]
        %v260 = vld [vmem:[%s216 + $0x38] sm:$0xff]
        %v261 = vld [vmem:[%s216 + $0x40] sm:$0xff]
        %v262 = vld [vmem:[%s216 + $0x48] sm:$0xff]
        %v263 = vld [vmem:[%s216 + $0x50] sm:$0xff]
        %v264 = vld [vmem:[%s216 + $0x58] sm:$0xff]
        %v265 = vld [vmem:[%s216 + $0x60] sm:$0xff]
        %v266 = vld [vmem:[%s216 + $0x68] sm:$0xff]
        %v267 = vld [vmem:[%s216 + $0x70] sm:$0xff]
        %v268 = vld [vmem:[%s216 + $0x78] sm:$0xff]
        %v269 = vld [vmem:[#allocation5] sm:$0xff]
        %v270 = vld [vmem:[#allocation5 + $0x8] sm:$0xff]
        %v271 = vmul.f32 %v253, 2.0
        %v272 = vmul.f32 %v254, 2.0
        %v273 = vmul.f32 %v255, 2.0
        %v274 = vmul.f32 %v256, 2.0
        %v275 = vmul.f32 %v257, 2.0
        %v276 = vmul.f32 %v258, 2.0
        %v277 = vmul.f32 %v259, 2.0
        %v278 = vmul.f32 %v260, 2.0
        %v279 = vmul.f32 %v261, 2.0
        %v280 = vmul.f32 %v262, 2.0
        %v281 = vmul.f32 %v263, 2.0
        %v282 = vmul.f32 %v264, 2.0
        %v283 = vmul.f32 %v265, 2.0
        %v284 = vmul.f32 %v266, 2.0
        %v285 = vmul.f32 %v267, 2.0
        %v286 = vmul.f32 %v268, 2.0
        %v287 = vadd.f32 %v271, %v269
        %v288 = vadd.f32 %v272, %v270
        %v289 = vadd.f32 %v273, %v269
        %v290 = vadd.f32 %v274, %v270
        %v291 = vadd.f32 %v275, %v269
        %v292 = vadd.f32 %v276, %v270
        %v293 = vadd.f32 %v277, %v269
        %v294 = vadd.f32 %v278, %v270
        %v295 = vadd.f32 %v279, %v269
        %v296 = vadd.f32 %v280, %v270
        %v297 = vadd.f32 %v281, %v269
        %v298 = vadd.f32 %v282, %v270
        %v299 = vadd.f32 %v283, %v269
        %v300 = vadd.f32 %v284, %v270
        %v301 = vadd.f32 %v285, %v269
        %v302 = vadd.f32 %v286, %v270
        %303 = vadd.xlane.f32.xlu0 %v287
        %v304 = vpop.xlane.xlu0 %303
        %305 = vadd.xlane.f32.xlu0 %v288
        %v306 = vpop.xlane.xlu0 %305
        %307 = vadd.xlane.f32.xlu0 %v289
        %v308 = vpop.xlane.xlu0 %307
        %309 = vadd.xlane.f32.xlu0 %v290
        %v310 = vpop.xlane.xlu0 %309
        %311 = vadd.xlane.f32.xlu0 %v291
        %v312 = vpop.xlane.xlu0 %311
        %313 = vadd.xlane.f32.xlu0 %v292
        %v314 = vpop.xlane.xlu0 %313
        %315 = vadd.xlane.f32.xlu0 %v293
        %v316 = vpop.xlane.xlu0 %315
        %317 = vadd.xlane.f32.xlu0 %v294
        %v318 = vpop.xlane.xlu0 %317
        %319 = vadd.xlane.f32.xlu0 %v295
        %v320 = vpop.xlane.xlu0 %319
        %321 = vadd.xlane.f32.xlu0 %v296
        %v322 = vpop.xlane.xlu0 %321
        %323 = vadd.xlane.f32.xlu0 %v297
        %v324 = vpop.xlane.xlu0 %323
        %325 = vadd.xlane.f32.xlu0 %v298
        %v326 = vpop.xlane.xlu0 %325
        %327 = vadd.xlane.f32.xlu0 %v299
        %v328 = vpop.xlane.xlu0 %327
        %329 = vadd.xlane.f32.xlu0 %v300
        %v330 = vpop.xlane.xlu0 %329
        %331 = vadd.xlane.f32.xlu0 %v301
        %v332 = vpop.xlane.xlu0 %331
        %333 = vadd.xlane.f32.xlu0 %v302
        %v334 = vpop.xlane.xlu0 %333
        %v335 = vmul.f32 %v304, 0.0078125
        %v336 = vmul.f32 %v306, 0.0078125
        %v337 = vmul.f32 %v308, 0.0078125
        %v338 = vmul.f32 %v310, 0.0078125
        %v339 = vmul.f32 %v312, 0.0078125
        %v340 = vmul.f32 %v314, 0.0078125
        %v341 = vmul.f32 %v316, 0.0078125
        %v342 = vmul.f32 %v318, 0.0078125
        %v343 = vmul.f32 %v320, 0.0078125
        %v344 = vmul.f32 %v322, 0.0078125
        %v345 = vmul.f32 %v324, 0.0078125
        %v346 = vmul.f32 %v326, 0.0078125
        %v347 = vmul.f32 %v328, 0.0078125
        %v348 = vmul.f32 %v330, 0.0078125
        %v349 = vmul.f32 %v332, 0.0078125
        %v350 = vmul.f32 %v334, 0.0078125
        %v351 = vmul.f32 %v287, %v287
        %v352 = vmul.f32 %v288, %v288
        %v353 = vmul.f32 %v289, %v289
        %v354 = vmul.f32 %v290, %v290
        %v355 = vmul.f32 %v291, %v291
        %v356 = vmul.f32 %v292, %v292
        %v357 = vmul.f32 %v293, %v293
        %v358 = vmul.f32 %v294, %v294
        %v359 = vmul.f32 %v295, %v295
        %v360 = vmul.f32 %v296, %v296
        %v361 = vmul.f32 %v297, %v297
        %v362 = vmul.f32 %v298, %v298
        %v363 = vmul.f32 %v299, %v299
        %v364 = vmul.f32 %v300, %v300
        %v365 = vmul.f32 %v301, %v301
        %v366 = vmul.f32 %v302, %v302
        %367 = vadd.xlane.f32.xlu0 %v351
        %v368 = vpop.xlane.xlu0 %367
        %369 = vadd.xlane.f32.xlu0 %v352
        %v370 = vpop.xlane.xlu0 %369
        %371 = vadd.xlane.f32.xlu0 %v353
        %v372 = vpop.xlane.xlu0 %371
        %373 = vadd.xlane.f32.xlu0 %v354
        %v374 = vpop.xlane.xlu0 %373
        %375 = vadd.xlane.f32.xlu0 %v355
        %v376 = vpop.xlane.xlu0 %375
        %377 = vadd.xlane.f32.xlu0 %v356
        %v378 = vpop.xlane.xlu0 %377
        %379 = vadd.xlane.f32.xlu0 %v357
        %v380 = vpop.xlane.xlu0 %379
        %381 = vadd.xlane.f32.xlu0 %v358
        %v382 = vpop.xlane.xlu0 %381
        %383 = vadd.xlane.f32.xlu0 %v359
        %v384 = vpop.xlane.xlu0 %383
        %385 = vadd.xlane.f32.xlu0 %v360
        %v386 = vpop.xlane.xlu0 %385
        %387 = vadd.xlane.f32.xlu0 %v361
        %v388 = vpop.xlane.xlu0 %387
        %389 = vadd.xlane.f32.xlu0 %v362
        %v390 = vpop.xlane.xlu0 %389
        %391 = vadd.xlane.f32.xlu0 %v363
        %v392 = vpop.xlane.xlu0 %391
        %393 = vadd.xlane.f32.xlu0 %v364
        %v394 = vpop.xlane.xlu0 %393
        %395 = vadd.xlane.f32.xlu0 %v365
        %v396 = vpop.xlane.xlu0 %395
        %397 = vadd.xlane.f32.xlu0 %v366
        %v398 = vpop.xlane.xlu0 %397
        %v399 = vmul.f32 %v368, 0.0078125
        %v400 = vmul.f32 %v370, 0.0078125
        %v401 = vmul.f32 %v372, 0.0078125
        %v402 = vmul.f32 %v374, 0.0078125
        %v403 = vmul.f32 %v376, 0.0078125
        %v404 = vmul.f32 %v378, 0.0078125
        %v405 = vmul.f32 %v380, 0.0078125
        %v406 = vmul.f32 %v382, 0.0078125
        %v407 = vmul.f32 %v384, 0.0078125
        %v408 = vmul.f32 %v386, 0.0078125
        %v409 = vmul.f32 %v388, 0.0078125
        %v410 = vmul.f32 %v390, 0.0078125
        %v411 = vmul.f32 %v392, 0.0078125
        %v412 = vmul.f32 %v394, 0.0078125
        %v413 = vmul.f32 %v396, 0.0078125
        %v414 = vmul.f32 %v398, 0.0078125
        %v415 = vmul.f32 %v335, %v335
        %v416 = vmul.f32 %v336, %v336
        %v417 = vmul.f32 %v337, %v337
        %v418 = vmul.f32 %v338, %v338
        %v419 = vmul.f32 %v339, %v339
        %v420 = vmul.f32 %v340, %v340
        %v421 = vmul.f32 %v341, %v341
        %v422 = vmul.f32 %v342, %v342
        %v423 = vmul.f32 %v343, %v343
        %v424 = vmul.f32 %v344, %v344
        %v425 = vmul.f32 %v345, %v345
        %v426 = vmul.f32 %v346, %v346
        %v427 = vmul.f32 %v347, %v347
        %v428 = vmul.f32 %v348, %v348
        %v429 = vmul.f32 %v349, %v349
        %v430 = vmul.f32 %v350, %v350
        %v431 = vsub.f32 %v399, %v415
        %v432 = vsub.f32 %v400, %v416
        %v433 = vsub.f32 %v401, %v417
        %v434 = vsub.f32 %v402, %v418
        %v435 = vsub.f32 %v403, %v419
        %v436 = vsub.f32 %v404, %v420
        %v437 = vsub.f32 %v405, %v421
        %v438 = vsub.f32 %v406, %v422
        %v439 = vsub.f32 %v407, %v423
        %v440 = vsub.f32 %v408, %v424
        %v441 = vsub.f32 %v409, %v425
        %v442 = vsub.f32 %v410, %v426
        %v443 = vsub.f32 %v411, %v427
        %v444 = vsub.f32 %v412, %v428
        %v445 = vsub.f32 %v413, %v429
        %v446 = vsub.f32 %v414, %v430
        %v447 = vmax.f32 %v431, 0.0
        %v448 = vmax.f32 %v432, 0.0
        %v449 = vmax.f32 %v433, 0.0
        %v450 = vmax.f32 %v434, 0.0
        %v451 = vmax.f32 %v435, 0.0
        %v452 = vmax.f32 %v436, 0.0
        %v453 = vmax.f32 %v437, 0.0
        %v454 = vmax.f32 %v438, 0.0
        %v455 = vmax.f32 %v439, 0.0
        %v456 = vmax.f32 %v440, 0.0
        %v457 = vmax.f32 %v441, 0.0
        %v458 = vmax.f32 %v442, 0.0
        %v459 = vmax.f32 %v443, 0.0
        %v460 = vmax.f32 %v444, 0.0
        %v461 = vmax.f32 %v445, 0.0
        %v462 = vmax.f32 %v446, 0.0
        %v463 = vadd.f32 %v447, 1e-12
        %v464 = vadd.f32 %v448, 1e-12
        %v465 = vadd.f32 %v449, 1e-12
        %v466 = vadd.f32 %v450, 1e-12
        %v467 = vadd.f32 %v451, 1e-12
        %v468 = vadd.f32 %v452, 1e-12
        %v469 = vadd.f32 %v453, 1e-12
        %v470 = vadd.f32 %v454, 1e-12
        %v471 = vadd.f32 %v455, 1e-12
        %v472 = vadd.f32 %v456, 1e-12
        %v473 = vadd.f32 %v457, 1e-12
        %v474 = vadd.f32 %v458, 1e-12
        %v475 = vadd.f32 %v459, 1e-12
        %v476 = vadd.f32 %v460, 1e-12
        %v477 = vadd.f32 %v461, 1e-12
        %v478 = vadd.f32 %v462, 1e-12
        %v479 = vrsqrt.pop %v463
        %v480 = vmul.f32 %v479, %v463
        %v481 = vmul.f32 %v480, %v479
        %v482 = vmul.f32 0.5, %v481
        %v483 = vsub.f32 1.5, %v482
        %v484 = vmul.f32 %v479, %v483
        %vm485 = vweird.f32 %v463
        %vm486 = vweird.f32 %v479
        %vm487 = vmor %vm485, %vm486
        %v488 = vsel %vm487, %v479, %v484
        %v489 = vrsqrt.pop %v464
        %v490 = vmul.f32 %v489, %v464
        %v491 = vmul.f32 %v490, %v489
        %v492 = vmul.f32 0.5, %v491
        %v493 = vsub.f32 1.5, %v492
        %v494 = vmul.f32 %v489, %v493
        %vm495 = vweird.f32 %v464
        %vm496 = vweird.f32 %v489
        %vm497 = vmor %vm495, %vm496
        %v498 = vsel %vm497, %v489, %v494
        %v499 = vrsqrt.pop %v465
        %v500 = vmul.f32 %v499, %v465
        %v501 = vmul.f32 %v500, %v499
        %v502 = vmul.f32 0.5, %v501
        %v503 = vsub.f32 1.5, %v502
        %v504 = vmul.f32 %v499, %v503
        %vm505 = vweird.f32 %v465
        %vm506 = vweird.f32 %v499
        %vm507 = vmor %vm505, %vm506
        %v508 = vsel %vm507, %v499, %v504
        %v509 = vrsqrt.pop %v466
        %v510 = vmul.f32 %v509, %v466
        %v511 = vmul.f32 %v510, %v509
        %v512 = vmul.f32 0.5, %v511
        %v513 = vsub.f32 1.5, %v512
        %v514 = vmul.f32 %v509, %v513
        %vm515 = vweird.f32 %v466
        %vm516 = vweird.f32 %v509
        %vm517 = vmor %vm515, %vm516
        %v518 = vsel %vm517, %v509, %v514
        %v519 = vrsqrt.pop %v467
        %v520 = vmul.f32 %v519, %v467
        %v521 = vmul.f32 %v520, %v519
        %v522 = vmul.f32 0.5, %v521
        %v523 = vsub.f32 1.5, %v522
        %v524 = vmul.f32 %v519, %v523
        %vm525 = vweird.f32 %v467
        %vm526 = vweird.f32 %v519
        %vm527 = vmor %vm525, %vm526
        %v528 = vsel %vm527, %v519, %v524
        %v529 = vrsqrt.pop %v468
        %v530 = vmul.f32 %v529, %v468
        %v531 = vmul.f32 %v530, %v529
        %v532 = vmul.f32 0.5, %v531
        %v533 = vsub.f32 1.5, %v532
        %v534 = vmul.f32 %v529, %v533
        %vm535 = vweird.f32 %v468
        %vm536 = vweird.f32 %v529
        %vm537 = vmor %vm535, %vm536
        %v538 = vsel %vm537, %v529, %v534
        %v539 = vrsqrt.pop %v469
        %v540 = vmul.f32 %v539, %v469
        %v541 = vmul.f32 %v540, %v539
        %v542 = vmul.f32 0.5, %v541
        %v543 = vsub.f32 1.5, %v542
        %v544 = vmul.f32 %v539, %v543
        %vm545 = vweird.f32 %v469
        %vm546 = vweird.f32 %v539
        %vm547 = vmor %vm545, %vm546
        %v548 = vsel %vm547, %v539, %v544
        %v549 = vrsqrt.pop %v470
        %v550 = vmul.f32 %v549, %v470
        %v551 = vmul.f32 %v550, %v549
        %v552 = vmul.f32 0.5, %v551
        %v553 = vsub.f32 1.5, %v552
        %v554 = vmul.f32 %v549, %v553
        %vm555 = vweird.f32 %v470
        %vm556 = vweird.f32 %v549
        %vm557 = vmor %vm555, %vm556
        %v558 = vsel %vm557, %v549, %v554
        %v559 = vrsqrt.pop %v471
        %v560 = vmul.f32 %v559, %v471
        %v561 = vmul.f32 %v560, %v559
        %v562 = vmul.f32 0.5, %v561
        %v563 = vsub.f32 1.5, %v562
        %v564 = vmul.f32 %v559, %v563
        %vm565 = vweird.f32 %v471
        %vm566 = vweird.f32 %v559
        %vm567 = vmor %vm565, %vm566
        %v568 = vsel %vm567, %v559, %v564
        %v569 = vrsqrt.pop %v472
        %v570 = vmul.f32 %v569, %v472
        %v571 = vmul.f32 %v570, %v569
        %v572 = vmul.f32 0.5, %v571
        %v573 = vsub.f32 1.5, %v572
        %v574 = vmul.f32 %v569, %v573
        %vm575 = vweird.f32 %v472
        %vm576 = vweird.f32 %v569
        %vm577 = vmor %vm575, %vm576
        %v578 = vsel %vm577, %v569, %v574
        %v579 = vrsqrt.pop %v473
        %v580 = vmul.f32 %v579, %v473
        %v581 = vmul.f32 %v580, %v579
        %v582 = vmul.f32 0.5, %v581
        %v583 = vsub.f32 1.5, %v582
        %v584 = vmul.f32 %v579, %v583
        %vm585 = vweird.f32 %v473
        %vm586 = vweird.f32 %v579
        %vm587 = vmor %vm585, %vm586
        %v588 = vsel %vm587, %v579, %v584
        %v589 = vrsqrt.pop %v474
        %v590 = vmul.f32 %v589, %v474
        %v591 = vmul.f32 %v590, %v589
        %v592 = vmul.f32 0.5, %v591
        %v593 = vsub.f32 1.5, %v592
        %v594 = vmul.f32 %v589, %v593
        %vm595 = vweird.f32 %v474
        %vm596 = vweird.f32 %v589
        %vm597 = vmor %vm595, %vm596
        %v598 = vsel %vm597, %v589, %v594
        %v599 = vrsqrt.pop %v475
        %v600 = vmul.f32 %v599, %v475
        %v601 = vmul.f32 %v600, %v599
        %v602 = vmul.f32 0.5, %v601
        %v603 = vsub.f32 1.5, %v602
        %v604 = vmul.f32 %v599, %v603
        %vm605 = vweird.f32 %v475
        %vm606 = vweird.f32 %v599
        %vm607 = vmor %vm605, %vm606
        %v608 = vsel %vm607, %v599, %v604
        %v609 = vrsqrt.pop %v476
        %v610 = vmul.f32 %v609, %v476
        %v611 = vmul.f32 %v610, %v609
        %v612 = vmul.f32 0.5, %v611
        %v613 = vsub.f32 1.5, %v612
        %v614 = vmul.f32 %v609, %v613
        %vm615 = vweird.f32 %v476
        %vm616 = vweird.f32 %v609
        %vm617 = vmor %vm615, %vm616
        %v618 = vsel %vm617, %v609, %v614
        %v619 = vrsqrt.pop %v477
        %v620 = vmul.f32 %v619, %v477
        %v621 = vmul.f32 %v620, %v619
        %v622 = vmul.f32 0.5, %v621
        %v623 = vsub.f32 1.5, %v622
        %v624 = vmul.f32 %v619, %v623
        %vm625 = vweird.f32 %v477
        %vm626 = vweird.f32 %v619
        %vm627 = vmor %vm625, %vm626
        %v628 = vsel %vm627, %v619, %v624
        %v629 = vrsqrt.pop %v478
        %v630 = vmul.f32 %v629, %v478
        %v631 = vmul.f32 %v630, %v629
        %v632 = vmul.f32 0.5, %v631
        %v633 = vsub.f32 1.5, %v632
        %v634 = vmul.f32 %v629, %v633
        %vm635 = vweird.f32 %v478
        %vm636 = vweird.f32 %v629
        %vm637 = vmor %vm635, %vm636
        %v638 = vsel %vm637, %v629, %v634
        %v639 = vmul.f32 %v287, %v488
        %v640 = vmul.f32 %v288, %v498
        %v641 = vmul.f32 %v289, %v508
        %v642 = vmul.f32 %v290, %v518
        %v643 = vmul.f32 %v291, %v528
        %v644 = vmul.f32 %v292, %v538
        %v645 = vmul.f32 %v293, %v548
        %v646 = vmul.f32 %v294, %v558
        %v647 = vmul.f32 %v295, %v568
        %v648 = vmul.f32 %v296, %v578
        %v649 = vmul.f32 %v297, %v588
        %v650 = vmul.f32 %v298, %v598
        %v651 = vmul.f32 %v299, %v608
        %v652 = vmul.f32 %v300, %v618
        %v653 = vmul.f32 %v301, %v628
        %v654 = vmul.f32 %v302, %v638
        %v655 = vadd.f32 %v639, %v640
        %v656 = vrot.slane %v655, 4
        %v657 = vadd.f32 %v655, %v656
        %v658 = vrot.slane %v657, 2
        %v659 = vadd.f32 %v657, %v658
        %v660 = vrot.slane %v659, 1
        %v661 = vadd.f32 %v659, %v660
        %v662 = vadd.f32 %v641, %v642
        %v663 = vrot.slane %v662, 4
        %v664 = vadd.f32 %v662, %v663
        %v665 = vrot.slane %v664, 2
        %v666 = vadd.f32 %v664, %v665
        %v667 = vrot.slane %v666, 1
        %v668 = vadd.f32 %v666, %v667
        %v669 = vadd.f32 %v643, %v644
        %v670 = vrot.slane %v669, 4
        %v671 = vadd.f32 %v669, %v670
        %v672 = vrot.slane %v671, 2
        %v673 = vadd.f32 %v671, %v672
        %v674 = vrot.slane %v673, 1
        %v675 = vadd.f32 %v673, %v674
        %v676 = vadd.f32 %v645, %v646
        %v677 = vrot.slane %v676, 4
        %v678 = vadd.f32 %v676, %v677
        %v679 = vrot.slane %v678, 2
        %v680 = vadd.f32 %v678, %v679
        %v681 = vrot.slane %v680, 1
        %v682 = vadd.f32 %v680, %v681
        %v683 = vadd.f32 %v647, %v648
        %v684 = vrot.slane %v683, 4
        %v685 = vadd.f32 %v683, %v684
        %v686 = vrot.slane %v685, 2
        %v687 = vadd.f32 %v685, %v686
        %v688 = vrot.slane %v687, 1
        %v689 = vadd.f32 %v687, %v688
        %v690 = vadd.f32 %v649, %v650
        %v691 = vrot.slane %v690, 4
        %v692 = vadd.f32 %v690, %v691
        %v693 = vrot.slane %v692, 2
        %v694 = vadd.f32 %v692, %v693
        %v695 = vrot.slane %v694, 1
        %v696 = vadd.f32 %v694, %v695
        %v697 = vadd.f32 %v651, %v652
        %v698 = vrot.slane %v697, 4
        %v699 = vadd.f32 %v697, %v698
        %v700 = vrot.slane %v699, 2
        %v701 = vadd.f32 %v699, %v700
        %v702 = vrot.slane %v701, 1
        %v703 = vadd.f32 %v701, %v702
        %v704 = vadd.f32 %v653, %v654
        %v705 = vrot.slane %v704, 4
        %v706 = vadd.f32 %v704, %v705
        %v707 = vrot.slane %v706, 2
        %v708 = vadd.f32 %v706, %v707
        %v709 = vrot.slane %v708, 1
        %v710 = vadd.f32 %v708, %v709
        %v711 = vmul.f32 %v335, %v488
        %v712 = vmul.f32 %v336, %v498
        %v713 = vmul.f32 %v337, %v508
        %v714 = vmul.f32 %v338, %v518
        %v715 = vmul.f32 %v339, %v528
        %v716 = vmul.f32 %v340, %v538
        %v717 = vmul.f32 %v341, %v548
        %v718 = vmul.f32 %v342, %v558
        %v719 = vmul.f32 %v343, %v568
        %v720 = vmul.f32 %v344, %v578
        %v721 = vmul.f32 %v345, %v588
        %v722 = vmul.f32 %v346, %v598
        %v723 = vmul.f32 %v347, %v608
        %v724 = vmul.f32 %v348, %v618
        %v725 = vmul.f32 %v349, %v628
        %v726 = vmul.f32 %v350, %v638
        %v727 = vadd.f32 %v711, %v712
        %v728 = vrot.slane %v727, 4
        %v729 = vadd.f32 %v727, %v728
        %v730 = vrot.slane %v729, 2
        %v731 = vadd.f32 %v729, %v730
        %v732 = vrot.slane %v731, 1
        %v733 = vadd.f32 %v731, %v732
        %v734 = vadd.f32 %v713, %v714
        %v735 = vrot.slane %v734, 4
        %v736 = vadd.f32 %v734, %v735
        %v737 = vrot.slane %v736, 2
        %v738 = vadd.f32 %v736, %v737
        %v739 = vrot.slane %v738, 1
        %v740 = vadd.f32 %v738, %v739
        %v741 = vadd.f32 %v715, %v716
        %v742 = vrot.slane %v741, 4
        %v743 = vadd.f32 %v741, %v742
        %v744 = vrot.slane %v743, 2
        %v745 = vadd.f32 %v743, %v744
        %v746 = vrot.slane %v745, 1
        %v747 = vadd.f32 %v745, %v746
        %v748 = vadd.f32 %v717, %v718
        %v749 = vrot.slane %v748, 4
        %v750 = vadd.f32 %v748, %v749
        %v751 = vrot.slane %v750, 2
        %v752 = vadd.f32 %v750, %v751
        %v753 = vrot.slane %v752, 1
        %v754 = vadd.f32 %v752, %v753
        %v755 = vadd.f32 %v719, %v720
        %v756 = vrot.slane %v755, 4
        %v757 = vadd.f32 %v755, %v756
        %v758 = vrot.slane %v757, 2
        %v759 = vadd.f32 %v757, %v758
        %v760 = vrot.slane %v759, 1
        %v761 = vadd.f32 %v759, %v760
        %v762 = vadd.f32 %v721, %v722
        %v763 = vrot.slane %v762, 4
        %v764 = vadd.f32 %v762, %v763
        %v765 = vrot.slane %v764, 2
        %v766 = vadd.f32 %v764, %v765
        %v767 = vrot.slane %v766, 1
        %v768 = vadd.f32 %v766, %v767
        %v769 = vadd.f32 %v723, %v724
        %v770 = vrot.slane %v769, 4
        %v771 = vadd.f32 %v769, %v770
        %v772 = vrot.slane %v771, 2
        %v773 = vadd.f32 %v771, %v772
        %v774 = vrot.slane %v773, 1
        %v775 = vadd.f32 %v773, %v774
        %v776 = vadd.f32 %v725, %v726
        %v777 = vrot.slane %v776, 4
        %v778 = vadd.f32 %v776, %v777
        %v779 = vrot.slane %v778, 2
        %v780 = vadd.f32 %v778, %v779
        %v781 = vrot.slane %v780, 1
        %v782 = vadd.f32 %v780, %v781
        %v783 = vld [vmem:[%s3] sm:$0x3]
        %v784 = vld [vmem:[#allocation7] sm:$0xff]
        %v785 = vld [vmem:[#allocation7 + $0x8] sm:$0xff]
        %v786 = vld [vmem:[#allocation7 + $0x10] sm:$0xff]
        %v787 = vld [vmem:[#allocation7 + $0x18] sm:$0xff]
        %v788 = vld [vmem:[#allocation7 + $0x20] sm:$0xff]
        %v789 = vld [vmem:[#allocation7 + $0x28] sm:$0xff]
        %v790 = vld [vmem:[#allocation7 + $0x30] sm:$0xff]
        %v791 = vld [vmem:[#allocation7 + $0x38] sm:$0xff]
        %v792 = vld [vmem:[#allocation7 + $0x40] sm:$0xff]
        %v793 = vld [vmem:[#allocation7 + $0x48] sm:$0xff]
        %v794 = vld [vmem:[#allocation7 + $0x50] sm:$0xff]
        %v795 = vld [vmem:[#allocation7 + $0x58] sm:$0xff]
        %v796 = vld [vmem:[#allocation7 + $0x60] sm:$0xff]
        %v797 = vld [vmem:[#allocation7 + $0x68] sm:$0xff]
        %v798 = vld [vmem:[#allocation7 + $0x70] sm:$0xff]
        %v799 = vld [vmem:[#allocation7 + $0x78] sm:$0xff]
        %v800 = vperm.slane %v783, 0
        %vm809 = vcmask 1041409
        %v810 = vsel %vm809, %v668, %v661
        %vm811 = vcmask 1042434
        %v812 = vsel %vm811, %v675, %v810
        %vm813 = vcmask 1043459
        %v814 = vsel %vm813, %v682, %v812
        %vm815 = vcmask 1044484
        %v816 = vsel %vm815, %v689, %v814
        %vm817 = vcmask 1045509
        %v818 = vsel %vm817, %v696, %v816
        %vm819 = vcmask 1046534
        %v820 = vsel %vm819, %v703, %v818
        %vm821 = vcmask 1047559
        %v822 = vsel %vm821, %v710, %v820
        %824 = vmatpush.msra.mxu0 %v799
        %825 = vmatpush.msra.mxu0 %v798
        %826 = vmatpush.msra.mxu0 %v797
        %827 = vmatpush.msra.mxu0 %v796
        %828 = vmatpush.msra.mxu0 %v795
        %829 = vmatpush.msra.mxu0 %v794
        %830 = vmatpush.msra.mxu0 %v793
        %831 = vmatpush.msra.mxu0 %v792
        %832 = vmatpush.msra.mxu0 %v791
        %833 = vmatpush.msra.mxu0 %v790
        %834 = vmatpush.msra.mxu0 %v789
        %835 = vmatpush.msra.mxu0 %v788
        %836 = vmatpush.msra.mxu0 %v787
        %837 = vmatpush.msra.mxu0 %v786
        %838 = vmatpush.msra.mxu0 %v785
        %839 = vmatpush.msra.mxu0 %v784
        %840 = vmatmul.f32.gmra.mxu0 %v822
        %v841 = vpop.f32.mrf.mxu0
        %v842 = vadd.f32 %v800, %v841
        %843 = vdwg.mxu0
        %v844 = vperm.slane %v783, 1
        %v845 = vmul.f32 %v733, %v844
        %v846 = vmul.f32 %v740, %v844
        %v847 = vmul.f32 %v747, %v844
        %v848 = vmul.f32 %v754, %v844
        %v849 = vmul.f32 %v761, %v844
        %v850 = vmul.f32 %v768, %v844
        %v851 = vmul.f32 %v775, %v844
        %v852 = vmul.f32 %v782, %v844
        %v861 = vrot.slane %v846, 7
        %v862 = vsel %vm809, %v861, %v845
        %v863 = vrot.slane %v847, 6
        %v864 = vsel %vm811, %v863, %v862
        %v865 = vrot.slane %v848, 5
        %v866 = vsel %vm813, %v865, %v864
        %v867 = vrot.slane %v849, 4
        %v868 = vsel %vm815, %v867, %v866
        %v869 = vrot.slane %v850, 3
        %v870 = vsel %vm817, %v869, %v868
        %v871 = vrot.slane %v851, 2
        %v872 = vsel %vm819, %v871, %v870
        %v873 = vrot.slane %v852, 1
        %v874 = vsel %vm821, %v873, %v872
        %v876 = vsub.f32 %v842, %v874
        %v877 = vmax.f32 %v876, 0.0
        %878 = vst [vmem:[%s251] sm:$0xff] %v877
        %s879 = sand.u32 %s119, 1
        %s880 = scalar_lea.sflag [#allocation4], %s879
        %s881 = sand.u32 %s119, 1
        %s882 = smul.addr %s881, 8
        %s883 = scalar_lea.vmem [#allocation8], %s882
        // Predicated region
        $region49: #{tpu_custom_call.1} parent=35 // pred_check
          %p884 = pneg %p129
        $region50: #{tpu_custom_call.1} parent=35 // pred_check_branch
          %886 = sbr.rel (%p884) target = $region52
        $region51: #{tpu_custom_call.1} parent=35 // pred_region
          %888 = vsyncadd %s880, 0
          %s889 = smul.addr %s22, 8
          %s890 = scalar_lea.hbm %s4, %s889
          %s892 = sshll.u32 %s883, 4
          %s893 = int_to_ptr.vmem [resolvable:$true] %s892
          %s894 = sshll.u32 %s890, 4
          %s895 = int_to_ptr.hbm [resolvable:$true] %s894
          %897 = dma.vmem_to_hbm [thread:$0]  %s893, 128, %s895, %s880
        $region52: #{tpu_custom_call.1} parent=35 // pred_fallthru
          _
      $region36: #{tpu_custom_call.1} parent=5 // pred_fallthru
        _
      %p898 = scmp.le.s32.totalorder 2, %s17
      // Predicated region
      $region53: #{tpu_custom_call.1} parent=5 // pred_check
        %p899 = pneg %p898
      $region54: #{tpu_custom_call.1} parent=5 // pred_check_branch
        %901 = sbr.rel (%p899) target = $region56
      $region55: #{tpu_custom_call.1} parent=5 // pred_region
        %s902 = ssub.s32 %s17, 2
        // Predicated region
        $region57: #{tpu_custom_call.1} parent=55 // pred_check
          %p903 = pneg %p135
        $region58: #{tpu_custom_call.1} parent=55 // pred_check_branch
          %905 = sbr.rel (%p903) target = $region60
        $region59: #{tpu_custom_call.1} parent=55 // pred_region
          %s906 = sand.u32 %s120, 1
          %s907 = scalar_lea.sflag [#allocation4], %s906
          %s908 = sand.u32 %s120, 1
          %s909 = smul.addr %s908, 8
          %s910 = scalar_lea.vmem [#allocation8], %s909
          %912 = dma.done %s907, 128
        $region60: #{tpu_custom_call.1} parent=55 // pred_fallthru
          _
      $region56: #{tpu_custom_call.1} parent=5 // pred_fallthru
        _
    $region6: #{tpu_custom_call.1} parent=1 // loop_footer
      %s21 = sadd.s32 1, %s17
    $region7: #{tpu_custom_call.1} parent=1 // loop_footer_branch
      %16 = sbr.rel target = $region3
    $region8: #{tpu_custom_call.1} parent=1 // loop_exit
      _
    %913 = vsyncpa [#allocation3], 1
    %s914 = scalar_lea.sflag [#allocation3], 1
    %915 = vsyncpa %s914, 1
    %916 = vsyncpa [#allocation6], 1
    %917 = vsyncpa [#allocation4], 1
    %s918 = scalar_lea.sflag [#allocation4], 1
    %919 = vsyncpa %s918, 1

</llo_original>
